<compile_context>
chip_gen: v6e
topology: v6e:2x2x1
jax: 0.10.0
libtpu: 0.0.40
codegen_flags: <defaults>
</compile_context>

<pallas_src>
import jax
import jax.numpy as jnp
from jax.experimental import pallas as pl
from jax.experimental.pallas import tpu as pltpu

# Logical (PyTorch) sizes.
D_IN, H1, H2, H3, D_OUT = 2, 400, 600, 400, 1
# Padded sizes used inside the kernel.
P1, P2, P3, P_OUT = 512, 640, 512, 128
# Offsets of each bias inside the single packed bias row (all 128-aligned).
B_OFF1 = 0
B_OFF2 = P1                    # 512
B_OFF3 = P1 + P2               # 1152
B_OFF4 = P1 + P2 + P3          # 1664
B_TOT = B_OFF4 + 128           # 1792
# Cap on rows per grid step (activation footprint stays ~1 MiB).
TB_MAX = 256


def _actor_kernel(s_ref, w1_ref, w2_ref, w3_ref, w4_ref, b_ref, out_ref):
    # Packed biases: static, 128-aligned lane slices (free views).
    b1 = b_ref[:, B_OFF1:B_OFF1 + P1]          # (1, P1)
    b2 = b_ref[:, B_OFF2:B_OFF2 + P2]          # (1, P2)
    b3 = b_ref[:, B_OFF3:B_OFF3 + P3]          # (1, P3)
    b4 = b_ref[:, B_OFF4:B_OFF4 + 1]           # (1, 1)

    s = s_ref[...]                             # (TB, 2) f32, un-padded lanes

    # fc (Linear(2, 400), NO activation): K=2 -> VPU rank-2 update, skip MXU.
    x = s[:, 0:1] * w1_ref[0:1, :] + s[:, 1:2] * w1_ref[1:2, :] + b1   # (TB, P1) f32

    # hd (Linear(400, 600)) + tanh: bf16 MXU inputs, f32 accumulation.
    x = jnp.tanh(jnp.dot(x.astype(jnp.bfloat16), w2_ref[...],
                         preferred_element_type=jnp.float32) + b2)     # (TB, P2) f32

    # hd2 (Linear(600, 400)) + tanh: bf16 MXU inputs, f32 accumulation.
    x = jnp.tanh(jnp.dot(x.astype(jnp.bfloat16), w3_ref[...],
                         preferred_element_type=jnp.float32) + b3)     # (TB, P3) f32

    # mu_layer (Linear(400, 1)): padded to N=128 on the MXU so the output
    # block is lane-dense (unmasked stores); only column 0 is real.
    out_ref[...] = jnp.dot(x.astype(jnp.bfloat16), w4_ref[...],
                           preferred_element_type=jnp.float32) + b4    # (TB, 128)


def _pad2(a, rows, cols):
    return jnp.pad(a, ((0, rows - a.shape[0]), (0, cols - a.shape[1])))


def prepare_params(params):
    """Pad/pack weights ONCE; cache and reuse the result for every forward call."""
    (w1, b1), (w2, b2), (w3, b3), (w4, b4) = params
    # fc weight stays f32 (used on the VPU as a rank-2 update).
    w1p = _pad2(w1.astype(jnp.float32), 8, P1)                           # (8, 512) f32
    # MXU weights stored bf16 (accumulation stays f32 in-kernel).
    w2p = _pad2(w2.astype(jnp.float32), P1, P2).astype(jnp.bfloat16)     # (512, 640)
    w3p = _pad2(w3.astype(jnp.float32), P2, P3).astype(jnp.bfloat16)     # (640, 512)
    w4p = _pad2(w4.astype(jnp.float32), P3, P_OUT).astype(jnp.bfloat16)  # (512, 128)
    bcat = jnp.zeros((1, B_TOT), jnp.float32)
    bcat = bcat.at[0, B_OFF1:B_OFF1 + H1].set(b1.astype(jnp.float32))
    bcat = bcat.at[0, B_OFF2:B_OFF2 + H2].set(b2.astype(jnp.float32))
    bcat = bcat.at[0, B_OFF3:B_OFF3 + H3].set(b3.astype(jnp.float32))
    bcat = bcat.at[0, B_OFF4:B_OFF4 + D_OUT].set(b4.astype(jnp.float32))
    return w1p, w2p, w3p, w4p, bcat


def _choose_tb(batch):
    """Rows per grid step: >=2 tiles when the batch allows it (v7x megacore),
    rounded up to the sublane granule (8), capped so activations stay small."""
    half = -(-batch // 2)          # ceil(B / 2)
    tb = -(-half // 8) * 8         # round up to multiple of 8
    return max(8, min(tb, TB_MAX))


@jax.jit
def actor_forward(s, padded_params):
    """s: (B, 2) float32 -> (B, 1) float32."""
    w1p, w2p, w3p, w4p, bcat = padded_params
    B = s.shape[0]
    tb = _choose_tb(B)
    n_tiles = pl.cdiv(B, tb)
    Bp = n_tiles * tb
    # Only batch rows are padded; lanes stay at 2 (block last dim == array dim).
    s_p = jnp.pad(s.astype(jnp.float32), ((0, Bp - B), (0, 0)))

    def resident(shp):  # constant block index -> stays VMEM-resident, no re-DMA
        return pl.BlockSpec(shp, lambda i: (0, 0))

    out_p = pl.pallas_call(
        _actor_kernel,
        out_shape=jax.ShapeDtypeStruct((Bp, P_OUT), jnp.float32),
        grid=(n_tiles,),
        in_specs=[
            pl.BlockSpec((tb, D_IN), lambda i: (i, 0)),   # s: batch-tiled, pipelined
            resident((8, P1)),                             # fc weight (f32)
            resident((P1, P2)),                            # hd weight (bf16)
            resident((P2, P3)),                            # hd2 weight (bf16)
            resident((P3, P_OUT)),                         # mu_layer weight (bf16)
            resident((1, B_TOT)),                          # packed biases (f32)
        ],
        out_specs=pl.BlockSpec((tb, P_OUT), lambda i: (i, 0)),
        # Batch tiles are independent -> parallel (shards across v7x's 2 TCs).
        compiler_params=pltpu.CompilerParams(
            dimension_semantics=("parallel",),
            vmem_limit_bytes=32 * 1024 * 1024),
    )(s_p, w1p, w2p, w3p, w4p, bcat)

    return out_p[:B, :D_OUT]


def init_params(key):
    """Deterministic init: xavier-uniform weights, PyTorch-default uniform biases."""
    def xavier(k, fan_in, fan_out):
        bound = (6.0 / (fan_in + fan_out)) ** 0.5
        return jax.random.uniform(k, (fan_in, fan_out), jnp.float32, -bound, bound)

    def bias(k, fan_in, fan_out):
        bound = 1.0 / (fan_in ** 0.5)
        return jax.random.uniform(k, (fan_out,), jnp.float32, -bound, bound)

    ks = jax.random.split(key, 8)
    dims = [(D_IN, H1), (H1, H2), (H2, H3), (H3, D_OUT)]
    params = []
    for idx, (fi, fo) in enumerate(dims):
        w = xavier(ks[2 * idx], fi, fo)
        b = bias(ks[2 * idx + 1], fi, fo)
        params.append((w, b))
    return tuple(params)


def _reference_f32(s, params):
    (w1, b1), (w2, b2), (w3, b3), (w4, b4) = params
    x = s @ w1 + b1
    x = jnp.tanh(x @ w2 + b2)
    x = jnp.tanh(x @ w3 + b3)
    return x @ w4 + b4


def _reference_bf16(s, params):
    """Mimics the kernel's precision choices (bf16 MXU inputs, f32 accumulation)."""
    (w1, b1), (w2, b2), (w3, b3), (w4, b4) = params
    x = s @ w1 + b1
    x = jnp.tanh(jnp.dot(x.astype(jnp.bfloat16), w2.astype(jnp.bfloat16),
                         preferred_element_type=jnp.float32) + b2)
    x = jnp.tanh(jnp.dot(x.astype(jnp.bfloat16), w3.astype(jnp.bfloat16),
                         preferred_element_type=jnp.float32) + b3)
    return jnp.dot(x.astype(jnp.bfloat16), w4.astype(jnp.bfloat16),
                   preferred_element_type=jnp.float32) + b4


if __name__ == "__main__":
    key = jax.random.PRNGKey(0)
    k_param, k_data = jax.random.split(key)

    params = init_params(k_param)
    padded = prepare_params(params)          # pad/pack once, reuse every call

    # Small batch of 2D states (e.g. [relative distance, relative velocity]).
    B = 8
    s = jax.random.normal(k_data, (B, D_IN), jnp.float32)

    out = actor_forward(s, padded)
    out = jax.block_until_ready(out)
    assert out.shape == (B, 1), out.shape

    # Tight check against a reference that uses the same bf16-input / f32-acc
    # precision as the kernel.
    ref_bf16 = _reference_bf16(s, params)
    assert jnp.allclose(out, ref_bf16, atol=5e-3, rtol=5e-3), (
        f"max abs err vs bf16 ref {jnp.max(jnp.abs(out - ref_bf16))}")

    # Loose check against the full-f32 PyTorch-equivalent math (bf16 matmuls
    # introduce ~1e-2-level absolute error, acceptable for a DDPG actor).
    ref_f32 = _reference_f32(s, params)
    assert jnp.allclose(out, ref_f32, atol=5e-2, rtol=5e-2), (
        f"max abs err vs f32 ref {jnp.max(jnp.abs(out - ref_f32))}")

    print("KERNEL_OK")
</pallas_src>

<mosaic_0001>
module attributes {stable_mosaic.version = 11 : i64} {
  func.func @_actor_kernel(%arg0: i32, %arg1: memref<8x2xf32, #tpu.memory_space<vmem>>, %arg2: memref<8x512xf32, #tpu.memory_space<vmem>>, %arg3: memref<512x640xbf16, #tpu.memory_space<vmem>>, %arg4: memref<640x512xbf16, #tpu.memory_space<vmem>>, %arg5: memref<512x128xbf16, #tpu.memory_space<vmem>>, %arg6: memref<1x1792xf32, #tpu.memory_space<vmem>>, %arg7: memref<8x128xf32, #tpu.memory_space<vmem>>) attributes {dimension_semantics = [#tpu.dimension_semantics<parallel>], iteration_bounds = array<i64: 1>, scalar_prefetch = 0 : i64, scratch_operands = 0 : i64, tpu.core_type = #tpu.core_type<tc>, window_params = [{transform_indices = @transform_0, window_bounds = array<i64: 8, 2>}, {pipeline_mode = #tpu.pipeline_mode<synchronous>, transform_indices = @transform_1, window_bounds = array<i64: 8, 512>}, {pipeline_mode = #tpu.pipeline_mode<synchronous>, transform_indices = @transform_2, window_bounds = array<i64: 512, 640>}, {pipeline_mode = #tpu.pipeline_mode<synchronous>, transform_indices = @transform_3, window_bounds = array<i64: 640, 512>}, {pipeline_mode = #tpu.pipeline_mode<synchronous>, transform_indices = @transform_4, window_bounds = array<i64: 512, 128>}, {pipeline_mode = #tpu.pipeline_mode<synchronous>, transform_indices = @transform_5, window_bounds = array<i64: 1, 1792>}, {transform_indices = @transform_6, window_bounds = array<i64: 8, 128>}]} {
    %c0 = arith.constant 0 : index
    %c0_0 = arith.constant 0 : index
    %0 = vector.load %arg6[%c0, %c0_0] : memref<1x1792xf32, #tpu.memory_space<vmem>>, vector<1x512xf32>
    %c0_1 = arith.constant 0 : index
    %c512 = arith.constant 512 : index
    %1 = vector.load %arg6[%c0_1, %c512] : memref<1x1792xf32, #tpu.memory_space<vmem>>, vector<1x640xf32>
    %c0_2 = arith.constant 0 : index
    %c1152 = arith.constant 1152 : index
    %2 = vector.load %arg6[%c0_2, %c1152] : memref<1x1792xf32, #tpu.memory_space<vmem>>, vector<1x512xf32>
    %c0_3 = arith.constant 0 : index
    %c1664 = arith.constant 1664 : index
    %3 = vector.load %arg6[%c0_3, %c1664] : memref<1x1792xf32, #tpu.memory_space<vmem>>, vector<1x1xf32>
    %c0_4 = arith.constant 0 : index
    %c0_5 = arith.constant 0 : index
    %4 = vector.load %arg1[%c0_4, %c0_5] : memref<8x2xf32, #tpu.memory_space<vmem>>, vector<8x2xf32>
    %5 = vector.extract_strided_slice %4 {offsets = [0, 0], sizes = [8, 1], strides = [1, 1]} : vector<8x2xf32> to vector<8x1xf32>
    %c0_6 = arith.constant 0 : index
    %c0_7 = arith.constant 0 : index
    %6 = vector.load %arg2[%c0_6, %c0_7] : memref<8x512xf32, #tpu.memory_space<vmem>>, vector<1x512xf32>
    %7 = vector.broadcast %5 : vector<8x1xf32> to vector<8x512xf32>
    %8 = vector.broadcast %6 : vector<1x512xf32> to vector<8x512xf32>
    %9 = arith.mulf %7, %8 : vector<8x512xf32>
    %10 = vector.extract_strided_slice %4 {offsets = [0, 1], sizes = [8, 1], strides = [1, 1]} : vector<8x2xf32> to vector<8x1xf32>
    %c1 = arith.constant 1 : index
    %c0_8 = arith.constant 0 : index
    %11 = vector.load %arg2[%c1, %c0_8] : memref<8x512xf32, #tpu.memory_space<vmem>>, vector<1x512xf32>
    %12 = vector.broadcast %10 : vector<8x1xf32> to vector<8x512xf32>
    %13 = vector.broadcast %11 : vector<1x512xf32> to vector<8x512xf32>
    %14 = arith.mulf %12, %13 : vector<8x512xf32>
    %15 = arith.addf %9, %14 : vector<8x512xf32>
    %16 = vector.broadcast %0 : vector<1x512xf32> to vector<8x512xf32>
    %17 = arith.addf %15, %16 : vector<8x512xf32>
    %18 = arith.truncf %17 : vector<8x512xf32> to vector<8x512xbf16>
    %c0_9 = arith.constant 0 : index
    %c0_10 = arith.constant 0 : index
    %19 = vector.load %arg3[%c0_9, %c0_10] : memref<512x640xbf16, #tpu.memory_space<vmem>>, vector<512x640xbf16>
    %cst = arith.constant dense<0.000000e+00> : vector<8x640xf32>
    %20 = tpu.matmul %18, %19, %cst {dimension_numbers = #tpu.dot_dimension_numbers<[1], [0], [0], [1], [0, 0, 1, 1], [], []>} : vector<8x512xbf16>, vector<512x640xbf16>, vector<8x640xf32> -> vector<8x640xf32>
    %21 = vector.broadcast %1 : vector<1x640xf32> to vector<8x640xf32>
    %22 = arith.addf %20, %21 : vector<8x640xf32>
    %23 = math.tanh %22 : vector<8x640xf32>
    %24 = arith.truncf %23 : vector<8x640xf32> to vector<8x640xbf16>
    %c0_11 = arith.constant 0 : index
    %c0_12 = arith.constant 0 : index
    %25 = vector.load %arg4[%c0_11, %c0_12] : memref<640x512xbf16, #tpu.memory_space<vmem>>, vector<640x512xbf16>
    %cst_13 = arith.constant dense<0.000000e+00> : vector<8x512xf32>
    %26 = tpu.matmul %24, %25, %cst_13 {dimension_numbers = #tpu.dot_dimension_numbers<[1], [0], [0], [1], [0, 0, 1, 1], [], []>} : vector<8x640xbf16>, vector<640x512xbf16>, vector<8x512xf32> -> vector<8x512xf32>
    %27 = vector.broadcast %2 : vector<1x512xf32> to vector<8x512xf32>
    %28 = arith.addf %26, %27 : vector<8x512xf32>
    %29 = math.tanh %28 : vector<8x512xf32>
    %30 = arith.truncf %29 : vector<8x512xf32> to vector<8x512xbf16>
    %c0_14 = arith.constant 0 : index
    %c0_15 = arith.constant 0 : index
    %31 = vector.load %arg5[%c0_14, %c0_15] : memref<512x128xbf16, #tpu.memory_space<vmem>>, vector<512x128xbf16>
    %cst_16 = arith.constant dense<0.000000e+00> : vector<8x128xf32>
    %32 = tpu.matmul %30, %31, %cst_16 {dimension_numbers = #tpu.dot_dimension_numbers<[1], [0], [0], [1], [0, 0, 1, 1], [], []>} : vector<8x512xbf16>, vector<512x128xbf16>, vector<8x128xf32> -> vector<8x128xf32>
    %33 = vector.broadcast %3 : vector<1x1xf32> to vector<8x128xf32>
    %34 = arith.addf %32, %33 : vector<8x128xf32>
    %c0_17 = arith.constant 0 : index
    %c0_18 = arith.constant 0 : index
    %35 = vector.load %arg7[%c0_17, %c0_18] : memref<8x128xf32, #tpu.memory_space<vmem>>, vector<8x128xf32>
    tpu.vector_store %arg7[%c0_17, %c0_18], %34 {strides = array<i32>} : memref<8x128xf32, #tpu.memory_space<vmem>>, vector<8x128xf32>,
    return
  }
  func.func @transform_0(%arg0: i32) -> (i32, i32) {
    %c0_i32 = arith.constant 0 : i32
    %c0_i32_0 = arith.constant 0 : i32
    return %arg0, %c0_i32 : i32, i32
  }
  func.func @transform_1(%arg0: i32) -> (i32, i32) {
    %c0_i32 = arith.constant 0 : i32
    %c0_i32_0 = arith.constant 0 : i32
    %c0_i32_1 = arith.constant 0 : i32
    return %c0_i32, %c0_i32_0 : i32, i32
  }
  func.func @transform_2(%arg0: i32) -> (i32, i32) {
    %c0_i32 = arith.constant 0 : i32
    %c0_i32_0 = arith.constant 0 : i32
    %c0_i32_1 = arith.constant 0 : i32
    return %c0_i32, %c0_i32_0 : i32, i32
  }
  func.func @transform_3(%arg0: i32) -> (i32, i32) {
    %c0_i32 = arith.constant 0 : i32
    %c0_i32_0 = arith.constant 0 : i32
    %c0_i32_1 = arith.constant 0 : i32
    return %c0_i32, %c0_i32_0 : i32, i32
  }
  func.func @transform_4(%arg0: i32) -> (i32, i32) {
    %c0_i32 = arith.constant 0 : i32
    %c0_i32_0 = arith.constant 0 : i32
    %c0_i32_1 = arith.constant 0 : i32
    return %c0_i32, %c0_i32_0 : i32, i32
  }
  func.func @transform_5(%arg0: i32) -> (i32, i32) {
    %c0_i32 = arith.constant 0 : i32
    %c0_i32_0 = arith.constant 0 : i32
    %c0_i32_1 = arith.constant 0 : i32
    return %c0_i32, %c0_i32_0 : i32, i32
  }
  func.func @transform_6(%arg0: i32) -> (i32, i32) {
    %c0_i32 = arith.constant 0 : i32
    %c0_i32_0 = arith.constant 0 : i32
    return %arg0, %c0_i32 : i32, i32
  }
}

</mosaic_0001>

<llo_original>
// kernel: actor_forward.1
$region0: #{actor_forward.1}
  #allocation0 [shape = 'u32[]', space=smem, size = 0x4, offset = 0x4, fixed_abs, tag = 'smem constant byte address 0x4 - core index']
  #allocation1 [shape = 'u32[144,128]{1,0:T(1,128)}', space=vmem, size = 0x12000, scoped, tag = 'internal scratch']
  %s0 = inlined_call_operand.vmem [shape: f32[8,2], index: 0, kind: input, shape index: {}]
  %s1 = inlined_call_operand.hbm [shape: f32[8,512], index: 1, kind: input, shape index: {}]
  %s2 = inlined_call_operand.hbm [shape: bf16[512,640], index: 2, kind: input, shape index: {}]
  %s3 = inlined_call_operand.hbm [shape: bf16[640,512], index: 3, kind: input, shape index: {}]
  %s4 = inlined_call_operand.hbm [shape: bf16[512,128], index: 4, kind: input, shape index: {}]
  %s5 = inlined_call_operand.vmem [shape: f32[1,1792], index: 5, kind: input, shape index: {}]
  %s6 = inlined_call_operand.vmem [shape: f32[8,128], index: 6, kind: output, shape index: {}]
  %s7 = sld [smem:[#allocation0]]
  $region50: #{actor_forward.1} parent=0
    _
  %s9 = ssub.s32 1, %s7
  %s10 = scalar_select 0, %s9, %s7
  $region1: #{actor_forward.1} parent=0
    #allocation2 [shape = 'u8[16384]{0}', space=vmem, size = 0x4000, scoped, tag = 'input window, operand 1, single buffered']
    #allocation3 [shape = 's32[1]{0}', space=sflag, size = 0x4, scoped, tag = 'scoped memory for actor_forward.1']
    #allocation4 [shape = 'u8[655360]{0}', space=vmem, size = 0xa0000, scoped, tag = 'input window, operand 2, single buffered']
    #allocation5 [shape = 's32[1]{0}', space=sflag, size = 0x4, scoped, tag = 'scoped memory for actor_forward.1']
    #allocation6 [shape = 'u8[655360]{0}', space=vmem, size = 0xa0000, scoped, tag = 'input window, operand 3, single buffered']
    #allocation7 [shape = 'u8[131072]{0}', space=vmem, size = 0x20000, scoped, tag = 'input window, operand 4, single buffered']
    #allocation8 [shape = 's32[1]{0}', space=sflag, size = 0x4, scoped, tag = 'scoped memory for actor_forward.1']
    %11 = vsyncpa [#allocation3], 0
    %12 = vsyncpa [#allocation5], 0
    %13 = vsyncpa [#allocation8], 0
    // Predicated region
    $region2: #{actor_forward.1} parent=1 // pred_check
      _
    $region3: #{actor_forward.1} parent=1 // pred_check_branch
      %15 = sbr.rel (0) target = $region5
    $region4: #{actor_forward.1} parent=1 // pred_region
      _
    $region5: #{actor_forward.1} parent=1 // pred_fallthru
      _
    // Predicated region
    $region6: #{actor_forward.1} parent=1 // pred_check
      _
    $region7: #{actor_forward.1} parent=1 // pred_check_branch
      %17 = sbr.rel (0) target = $region9
    $region8: #{actor_forward.1} parent=1 // pred_region
      %s19 = ssub.s32 512, 512
      %20 = vsyncadd [#allocation3], %s19
      %s22 = sshll.u32 [#allocation2], 4
      %s23 = int_to_ptr.vmem [resolvable:$true] %s22
      %25 = dma.hbm_to_vmem [thread:$0]  %s1, 512, %s23, [#allocation3]
    $region9: #{actor_forward.1} parent=1 // pred_fallthru
      _
    // Predicated region
    $region10: #{actor_forward.1} parent=1 // pred_check
      _
    $region11: #{actor_forward.1} parent=1 // pred_check_branch
      %27 = sbr.rel (0) target = $region13
    $region12: #{actor_forward.1} parent=1 // pred_region
      %s29 = ssub.s32 20480, 20480
      %30 = vsyncadd [#allocation5], %s29
      %s31 = sshll.u32 [#allocation4], 4
      %s32 = int_to_ptr.vmem [resolvable:$true] %s31
      %37 = dma.hbm_to_vmem [thread:$0]  %s2, 20480, %s32, [#allocation5], 320, 320, 20
    $region13: #{actor_forward.1} parent=1 // pred_fallthru
      _
    // Predicated region
    $region14: #{actor_forward.1} parent=1 // pred_check
      _
    $region15: #{actor_forward.1} parent=1 // pred_check_branch
      %39 = sbr.rel (0) target = $region17
    $region16: #{actor_forward.1} parent=1 // pred_region
      %s41 = ssub.s32 20480, 20480
      %42 = vsyncadd [#allocation5], %s41
      %s43 = sshll.u32 [#allocation6], 4
      %s44 = int_to_ptr.vmem [resolvable:$true] %s43
      %49 = dma.hbm_to_vmem [thread:$0]  %s3, 20480, %s44, [#allocation5], 256, 256, 16
    $region17: #{actor_forward.1} parent=1 // pred_fallthru
      _
    // Predicated region
    $region18: #{actor_forward.1} parent=1 // pred_check
      _
    $region19: #{actor_forward.1} parent=1 // pred_check_branch
      %51 = sbr.rel (0) target = $region21
    $region20: #{actor_forward.1} parent=1 // pred_region
      %s53 = ssub.s32 4096, 4096
      %54 = vsyncadd [#allocation8], %s53
      %s55 = sshll.u32 [#allocation7], 4
      %s56 = int_to_ptr.vmem [resolvable:$true] %s55
      %61 = dma.hbm_to_vmem [thread:$0]  %s4, 4096, %s56, [#allocation8], 64, 64, 4
    $region21: #{actor_forward.1} parent=1 // pred_fallthru
      _
    // Predicated region
    $region22: #{actor_forward.1} parent=1 // pred_check
      _
    $region23: #{actor_forward.1} parent=1 // pred_check_branch
      %63 = sbr.rel (0) target = $region25
    $region24: #{actor_forward.1} parent=1 // pred_region
      _
    $region25: #{actor_forward.1} parent=1 // pred_fallthru
      _
    // Predicated region
    $region26: #{actor_forward.1} parent=1 // pred_check
      _
    $region27: #{actor_forward.1} parent=1 // pred_check_branch
      %65 = sbr.rel (0) target = $region29
    $region28: #{actor_forward.1} parent=1 // pred_region
      %66 = dma.done [#allocation3], 512
    $region29: #{actor_forward.1} parent=1 // pred_fallthru
      _
    // Predicated region
    $region30: #{actor_forward.1} parent=1 // pred_check
      _
    $region31: #{actor_forward.1} parent=1 // pred_check_branch
      %68 = sbr.rel (0) target = $region33
    $region32: #{actor_forward.1} parent=1 // pred_region
      %69 = dma.done [#allocation5], 20480
    $region33: #{actor_forward.1} parent=1 // pred_fallthru
      _
    // Predicated region
    $region34: #{actor_forward.1} parent=1 // pred_check
      _
    $region35: #{actor_forward.1} parent=1 // pred_check_branch
      %71 = sbr.rel (0) target = $region37
    $region36: #{actor_forward.1} parent=1 // pred_region
      %72 = dma.done [#allocation5], 20480
    $region37: #{actor_forward.1} parent=1 // pred_fallthru
      _
    // Predicated region
    $region38: #{actor_forward.1} parent=1 // pred_check
      _
    $region39: #{actor_forward.1} parent=1 // pred_check_branch
      %74 = sbr.rel (0) target = $region41
    $region40: #{actor_forward.1} parent=1 // pred_region
      %75 = dma.done [#allocation8], 4096
    $region41: #{actor_forward.1} parent=1 // pred_fallthru
      _
    %v77 = vld [vmem:[%s5] sm:$0xf]
    %v78 = vld [vmem:[%s5 + $0x4] sm:$0x1f]
    %v79 = vld [vmem:[%s5 + $0x9] sm:$0xf]
    %v80 = vld [vmem:[%s5 + $0xd] sm:$0x1]
    %v81 = vld [vmem:[%s0] sm:$0xff]
    %v82 = vld [vmem:[#allocation2] ss:$8 sm:$0xf]
    %84 = vset.pattern.permute.xlu0 0
    %85 = vperm.xlu0 %84, %v81
    %v86 = vpop.permute.xlu0 %85
    %v89 = vlaneseq
    %v90 = vshrl.u32 %v89, 7
    %v91 = vsub.s32 0, %v90
    %v92 = vrot.slane %v82, %v91
    %v93 = vlaneseq
    %v94 = vshrl.u32 %v93, 7
    %v95 = vsub.s32 1, %v94
    %v96 = vrot.slane %v82, %v95
    %v97 = vlaneseq
    %v98 = vshrl.u32 %v97, 7
    %v99 = vsub.s32 2, %v98
    %v100 = vrot.slane %v82, %v99
    %v101 = vlaneseq
    %v102 = vshrl.u32 %v101, 7
    %v103 = vsub.s32 3, %v102
    %v104 = vrot.slane %v82, %v103
    %v109 = vmul.f32 %v86, %v92
    %v110 = vmul.f32 %v86, %v96
    %v111 = vmul.f32 %v86, %v100
    %v112 = vmul.f32 %v86, %v104
    %s113 = scalar_lea.vmem [#allocation2], 1
    %v114 = vld [vmem:[%s113] ss:$8 sm:$0xf]
    %115 = vset.pattern.permute.xlu0 1
    %116 = vperm.xlu0 %115, %v81
    %v117 = vpop.permute.xlu0 %116
    %v120 = vlaneseq
    %v121 = vshrl.u32 %v120, 7
    %v122 = vsub.s32 0, %v121
    %v123 = vrot.slane %v114, %v122
    %v124 = vlaneseq
    %v125 = vshrl.u32 %v124, 7
    %v126 = vsub.s32 1, %v125
    %v127 = vrot.slane %v114, %v126
    %v128 = vlaneseq
    %v129 = vshrl.u32 %v128, 7
    %v130 = vsub.s32 2, %v129
    %v131 = vrot.slane %v114, %v130
    %v132 = vlaneseq
    %v133 = vshrl.u32 %v132, 7
    %v134 = vsub.s32 3, %v133
    %v135 = vrot.slane %v114, %v134
    %v140 = vmul.f32 %v117, %v123
    %v141 = vmul.f32 %v117, %v127
    %v142 = vmul.f32 %v117, %v131
    %v143 = vmul.f32 %v117, %v135
    %v144 = vadd.f32 %v109, %v140
    %v145 = vadd.f32 %v110, %v141
    %v146 = vadd.f32 %v111, %v142
    %v147 = vadd.f32 %v112, %v143
    %v149 = vlaneseq
    %v150 = vshrl.u32 %v149, 7
    %v151 = vsub.s32 0, %v150
    %v152 = vrot.slane %v77, %v151
    %v153 = vlaneseq
    %v154 = vshrl.u32 %v153, 7
    %v155 = vsub.s32 1, %v154
    %v156 = vrot.slane %v77, %v155
    %v157 = vlaneseq
    %v158 = vshrl.u32 %v157, 7
    %v159 = vsub.s32 2, %v158
    %v160 = vrot.slane %v77, %v159
    %v161 = vlaneseq
    %v162 = vshrl.u32 %v161, 7
    %v163 = vsub.s32 3, %v162
    %v164 = vrot.slane %v77, %v163
    %v169 = vadd.f32 %v144, %v152
    %v170 = vadd.f32 %v145, %v156
    %v171 = vadd.f32 %v146, %v160
    %v172 = vadd.f32 %v147, %v164
    %v173 = vpack.c.bf16 %v169, %v169
    %v174 = vpack.c.bf16 %v170, %v170
    %v175 = vpack.c.bf16 %v171, %v171
    %v176 = vpack.c.bf16 %v172, %v172
    %v177 = vld [vmem:[#allocation4] sm:$0xff]
    %v178 = vld [vmem:[#allocation4 + $0x8] sm:$0xff]
    %v179 = vld [vmem:[#allocation4 + $0x10] sm:$0xf]
    %v180 = vld [vmem:[#allocation4 + $0x14] sm:$0xff]
    %v181 = vld [vmem:[#allocation4 + $0x1c] sm:$0xff]
    %v182 = vld [vmem:[#allocation4 + $0x24] sm:$0xf]
    %v183 = vld [vmem:[#allocation4 + $0x28] sm:$0xff]
    %v184 = vld [vmem:[#allocation4 + $0x30] sm:$0xff]
    %v185 = vld [vmem:[#allocation4 + $0x38] sm:$0xf]
    %v186 = vld [vmem:[#allocation4 + $0x3c] sm:$0xff]
    %v187 = vld [vmem:[#allocation4 + $0x44] sm:$0xff]
    %v188 = vld [vmem:[#allocation4 + $0x4c] sm:$0xf]
    %v189 = vld [vmem:[#allocation4 + $0x50] sm:$0xff]
    %v190 = vld [vmem:[#allocation4 + $0x58] sm:$0xff]
    %v191 = vld [vmem:[#allocation4 + $0x60] sm:$0xf]
    %v192 = vld [vmem:[#allocation4 + $0x64] sm:$0xff]
    %v193 = vld [vmem:[#allocation4 + $0x6c] sm:$0xff]
    %v194 = vld [vmem:[#allocation4 + $0x74] sm:$0xf]
    %v195 = vld [vmem:[#allocation4 + $0x78] sm:$0xff]
    %v196 = vld [vmem:[#allocation4 + $0x80] sm:$0xff]
    %v197 = vld [vmem:[#allocation4 + $0x88] sm:$0xf]
    %v198 = vld [vmem:[#allocation4 + $0x8c] sm:$0xff]
    %v199 = vld [vmem:[#allocation4 + $0x94] sm:$0xff]
    %v200 = vld [vmem:[#allocation4 + $0x9c] sm:$0xf]
    %v201 = vld [vmem:[#allocation4 + $0xa0] sm:$0xff]
    %v202 = vld [vmem:[#allocation4 + $0xa8] sm:$0xff]
    %v203 = vld [vmem:[#allocation4 + $0xb0] sm:$0xf]
    %v204 = vld [vmem:[#allocation4 + $0xb4] sm:$0xff]
    %v205 = vld [vmem:[#allocation4 + $0xbc] sm:$0xff]
    %v206 = vld [vmem:[#allocation4 + $0xc4] sm:$0xf]
    %v207 = vld [vmem:[#allocation4 + $0xc8] sm:$0xff]
    %v208 = vld [vmem:[#allocation4 + $0xd0] sm:$0xff]
    %v209 = vld [vmem:[#allocation4 + $0xd8] sm:$0xf]
    %v210 = vld [vmem:[#allocation4 + $0xdc] sm:$0xff]
    %v211 = vld [vmem:[#allocation4 + $0xe4] sm:$0xff]
    %v212 = vld [vmem:[#allocation4 + $0xec] sm:$0xf]
    %v213 = vld [vmem:[#allocation4 + $0xf0] sm:$0xff]
    %v214 = vld [vmem:[#allocation4 + $0xf8] sm:$0xff]
    %v215 = vld [vmem:[#allocation4 + $0x100] sm:$0xf]
    %v216 = vld [vmem:[#allocation4 + $0x104] sm:$0xff]
    %v217 = vld [vmem:[#allocation4 + $0x10c] sm:$0xff]
    %v218 = vld [vmem:[#allocation4 + $0x114] sm:$0xf]
    %v219 = vld [vmem:[#allocation4 + $0x118] sm:$0xff]
    %v220 = vld [vmem:[#allocation4 + $0x120] sm:$0xff]
    %v221 = vld [vmem:[#allocation4 + $0x128] sm:$0xf]
    %v222 = vld [vmem:[#allocation4 + $0x12c] sm:$0xff]
    %v223 = vld [vmem:[#allocation4 + $0x134] sm:$0xff]
    %v224 = vld [vmem:[#allocation4 + $0x13c] sm:$0xf]
    %v225 = vld [vmem:[#allocation4 + $0x140] sm:$0xff]
    %v226 = vld [vmem:[#allocation4 + $0x148] sm:$0xff]
    %v227 = vld [vmem:[#allocation4 + $0x150] sm:$0xf]
    %v228 = vld [vmem:[#allocation4 + $0x154] sm:$0xff]
    %v229 = vld [vmem:[#allocation4 + $0x15c] sm:$0xff]
    %v230 = vld [vmem:[#allocation4 + $0x164] sm:$0xf]
    %v231 = vld [vmem:[#allocation4 + $0x168] sm:$0xff]
    %v232 = vld [vmem:[#allocation4 + $0x170] sm:$0xff]
    %v233 = vld [vmem:[#allocation4 + $0x178] sm:$0xf]
    %v234 = vld [vmem:[#allocation4 + $0x17c] sm:$0xff]
    %v235 = vld [vmem:[#allocation4 + $0x184] sm:$0xff]
    %v236 = vld [vmem:[#allocation4 + $0x18c] sm:$0xf]
    %v237 = vld [vmem:[#allocation4 + $0x190] sm:$0xff]
    %v238 = vld [vmem:[#allocation4 + $0x198] sm:$0xff]
    %v239 = vld [vmem:[#allocation4 + $0x1a0] sm:$0xf]
    %v240 = vld [vmem:[#allocation4 + $0x1a4] sm:$0xff]
    %v241 = vld [vmem:[#allocation4 + $0x1ac] sm:$0xff]
    %v242 = vld [vmem:[#allocation4 + $0x1b4] sm:$0xf]
    %v243 = vld [vmem:[#allocation4 + $0x1b8] sm:$0xff]
    %v244 = vld [vmem:[#allocation4 + $0x1c0] sm:$0xff]
    %v245 = vld [vmem:[#allocation4 + $0x1c8] sm:$0xf]
    %v246 = vld [vmem:[#allocation4 + $0x1cc] sm:$0xff]
    %v247 = vld [vmem:[#allocation4 + $0x1d4] sm:$0xff]
    %v248 = vld [vmem:[#allocation4 + $0x1dc] sm:$0xf]
    %v249 = vld [vmem:[#allocation4 + $0x1e0] sm:$0xff]
    %v250 = vld [vmem:[#allocation4 + $0x1e8] sm:$0xff]
    %v251 = vld [vmem:[#allocation4 + $0x1f0] sm:$0xf]
    %v252 = vld [vmem:[#allocation4 + $0x1f4] sm:$0xff]
    %v253 = vld [vmem:[#allocation4 + $0x1fc] sm:$0xff]
    %v254 = vld [vmem:[#allocation4 + $0x204] sm:$0xf]
    %v255 = vld [vmem:[#allocation4 + $0x208] sm:$0xff]
    %v256 = vld [vmem:[#allocation4 + $0x210] sm:$0xff]
    %v257 = vld [vmem:[#allocation4 + $0x218] sm:$0xf]
    %v258 = vld [vmem:[#allocation4 + $0x21c] sm:$0xff]
    %v259 = vld [vmem:[#allocation4 + $0x224] sm:$0xff]
    %v260 = vld [vmem:[#allocation4 + $0x22c] sm:$0xf]
    %v261 = vld [vmem:[#allocation4 + $0x230] sm:$0xff]
    %v262 = vld [vmem:[#allocation4 + $0x238] sm:$0xff]
    %v263 = vld [vmem:[#allocation4 + $0x240] sm:$0xf]
    %v264 = vld [vmem:[#allocation4 + $0x244] sm:$0xff]
    %v265 = vld [vmem:[#allocation4 + $0x24c] sm:$0xff]
    %v266 = vld [vmem:[#allocation4 + $0x254] sm:$0xf]
    %v267 = vld [vmem:[#allocation4 + $0x258] sm:$0xff]
    %v268 = vld [vmem:[#allocation4 + $0x260] sm:$0xff]
    %v269 = vld [vmem:[#allocation4 + $0x268] sm:$0xf]
    %v270 = vld [vmem:[#allocation4 + $0x26c] sm:$0xff]
    %v271 = vld [vmem:[#allocation4 + $0x274] sm:$0xff]
    %v272 = vld [vmem:[#allocation4 + $0x27c] sm:$0xf]
    %v273 = vld [vmem:[#allocation4 + $0x280] sm:$0xff]
    %v274 = vld [vmem:[#allocation4 + $0x288] sm:$0xff]
    %v275 = vld [vmem:[#allocation4 + $0x290] sm:$0xf]
    %v276 = vld [vmem:[#allocation4 + $0x294] sm:$0xff]
    %v277 = vld [vmem:[#allocation4 + $0x29c] sm:$0xff]
    %v278 = vld [vmem:[#allocation4 + $0x2a4] sm:$0xf]
    %v279 = vld [vmem:[#allocation4 + $0x2a8] sm:$0xff]
    %v280 = vld [vmem:[#allocation4 + $0x2b0] sm:$0xff]
    %v281 = vld [vmem:[#allocation4 + $0x2b8] sm:$0xf]
    %v282 = vld [vmem:[#allocation4 + $0x2bc] sm:$0xff]
    %v283 = vld [vmem:[#allocation4 + $0x2c4] sm:$0xff]
    %v284 = vld [vmem:[#allocation4 + $0x2cc] sm:$0xf]
    %v285 = vld [vmem:[#allocation4 + $0x2d0] sm:$0xff]
    %v286 = vld [vmem:[#allocation4 + $0x2d8] sm:$0xff]
    %v287 = vld [vmem:[#allocation4 + $0x2e0] sm:$0xf]
    %v288 = vld [vmem:[#allocation4 + $0x2e4] sm:$0xff]
    %v289 = vld [vmem:[#allocation4 + $0x2ec] sm:$0xff]
    %v290 = vld [vmem:[#allocation4 + $0x2f4] sm:$0xf]
    %v291 = vld [vmem:[#allocation4 + $0x2f8] sm:$0xff]
    %v292 = vld [vmem:[#allocation4 + $0x300] sm:$0xff]
    %v293 = vld [vmem:[#allocation4 + $0x308] sm:$0xf]
    %v294 = vld [vmem:[#allocation4 + $0x30c] sm:$0xff]
    %v295 = vld [vmem:[#allocation4 + $0x314] sm:$0xff]
    %v296 = vld [vmem:[#allocation4 + $0x31c] sm:$0xf]
    %v297 = vld [vmem:[#allocation4 + $0x320] sm:$0xff]
    %v298 = vld [vmem:[#allocation4 + $0x328] sm:$0xff]
    %v299 = vld [vmem:[#allocation4 + $0x330] sm:$0xf]
    %v300 = vld [vmem:[#allocation4 + $0x334] sm:$0xff]
    %v301 = vld [vmem:[#allocation4 + $0x33c] sm:$0xff]
    %v302 = vld [vmem:[#allocation4 + $0x344] sm:$0xf]
    %v303 = vld [vmem:[#allocation4 + $0x348] sm:$0xff]
    %v304 = vld [vmem:[#allocation4 + $0x350] sm:$0xff]
    %v305 = vld [vmem:[#allocation4 + $0x358] sm:$0xf]
    %v306 = vld [vmem:[#allocation4 + $0x35c] sm:$0xff]
    %v307 = vld [vmem:[#allocation4 + $0x364] sm:$0xff]
    %v308 = vld [vmem:[#allocation4 + $0x36c] sm:$0xf]
    %v309 = vld [vmem:[#allocation4 + $0x370] sm:$0xff]
    %v310 = vld [vmem:[#allocation4 + $0x378] sm:$0xff]
    %v311 = vld [vmem:[#allocation4 + $0x380] sm:$0xf]
    %v312 = vld [vmem:[#allocation4 + $0x384] sm:$0xff]
    %v313 = vld [vmem:[#allocation4 + $0x38c] sm:$0xff]
    %v314 = vld [vmem:[#allocation4 + $0x394] sm:$0xf]
    %v315 = vld [vmem:[#allocation4 + $0x398] sm:$0xff]
    %v316 = vld [vmem:[#allocation4 + $0x3a0] sm:$0xff]
    %v317 = vld [vmem:[#allocation4 + $0x3a8] sm:$0xf]
    %v318 = vld [vmem:[#allocation4 + $0x3ac] sm:$0xff]
    %v319 = vld [vmem:[#allocation4 + $0x3b4] sm:$0xff]
    %v320 = vld [vmem:[#allocation4 + $0x3bc] sm:$0xf]
    %v321 = vld [vmem:[#allocation4 + $0x3c0] sm:$0xff]
    %v322 = vld [vmem:[#allocation4 + $0x3c8] sm:$0xff]
    %v323 = vld [vmem:[#allocation4 + $0x3d0] sm:$0xf]
    %v324 = vld [vmem:[#allocation4 + $0x3d4] sm:$0xff]
    %v325 = vld [vmem:[#allocation4 + $0x3dc] sm:$0xff]
    %v326 = vld [vmem:[#allocation4 + $0x3e4] sm:$0xf]
    %v327 = vld [vmem:[#allocation4 + $0x3e8] sm:$0xff]
    %v328 = vld [vmem:[#allocation4 + $0x3f0] sm:$0xff]
    %v329 = vld [vmem:[#allocation4 + $0x3f8] sm:$0xf]
    %v330 = vld [vmem:[#allocation4 + $0x3fc] sm:$0xff]
    %v331 = vld [vmem:[#allocation4 + $0x404] sm:$0xff]
    %v332 = vld [vmem:[#allocation4 + $0x40c] sm:$0xf]
    %v333 = vld [vmem:[#allocation4 + $0x410] sm:$0xff]
    %v334 = vld [vmem:[#allocation4 + $0x418] sm:$0xff]
    %v335 = vld [vmem:[#allocation4 + $0x420] sm:$0xf]
    %v336 = vld [vmem:[#allocation4 + $0x424] sm:$0xff]
    %v337 = vld [vmem:[#allocation4 + $0x42c] sm:$0xff]
    %v338 = vld [vmem:[#allocation4 + $0x434] sm:$0xf]
    %v339 = vld [vmem:[#allocation4 + $0x438] sm:$0xff]
    %v340 = vld [vmem:[#allocation4 + $0x440] sm:$0xff]
    %v341 = vld [vmem:[#allocation4 + $0x448] sm:$0xf]
    %v342 = vld [vmem:[#allocation4 + $0x44c] sm:$0xff]
    %v343 = vld [vmem:[#allocation4 + $0x454] sm:$0xff]
    %v344 = vld [vmem:[#allocation4 + $0x45c] sm:$0xf]
    %v345 = vld [vmem:[#allocation4 + $0x460] sm:$0xff]
    %v346 = vld [vmem:[#allocation4 + $0x468] sm:$0xff]
    %v347 = vld [vmem:[#allocation4 + $0x470] sm:$0xf]
    %v348 = vld [vmem:[#allocation4 + $0x474] sm:$0xff]
    %v349 = vld [vmem:[#allocation4 + $0x47c] sm:$0xff]
    %v350 = vld [vmem:[#allocation4 + $0x484] sm:$0xf]
    %v351 = vld [vmem:[#allocation4 + $0x488] sm:$0xff]
    %v352 = vld [vmem:[#allocation4 + $0x490] sm:$0xff]
    %v353 = vld [vmem:[#allocation4 + $0x498] sm:$0xf]
    %v354 = vld [vmem:[#allocation4 + $0x49c] sm:$0xff]
    %v355 = vld [vmem:[#allocation4 + $0x4a4] sm:$0xff]
    %v356 = vld [vmem:[#allocation4 + $0x4ac] sm:$0xf]
    %v357 = vld [vmem:[#allocation4 + $0x4b0] sm:$0xff]
    %v358 = vld [vmem:[#allocation4 + $0x4b8] sm:$0xff]
    %v359 = vld [vmem:[#allocation4 + $0x4c0] sm:$0xf]
    %v360 = vld [vmem:[#allocation4 + $0x4c4] sm:$0xff]
    %v361 = vld [vmem:[#allocation4 + $0x4cc] sm:$0xff]
    %v362 = vld [vmem:[#allocation4 + $0x4d4] sm:$0xf]
    %v363 = vld [vmem:[#allocation4 + $0x4d8] sm:$0xff]
    %v364 = vld [vmem:[#allocation4 + $0x4e0] sm:$0xff]
    %v365 = vld [vmem:[#allocation4 + $0x4e8] sm:$0xf]
    %v366 = vld [vmem:[#allocation4 + $0x4ec] sm:$0xff]
    %v367 = vld [vmem:[#allocation4 + $0x4f4] sm:$0xff]
    %v368 = vld [vmem:[#allocation4 + $0x4fc] sm:$0xf]
    %v370 = vlaneseq
    %v371 = vshrl.u32 %v370, 7
    %v372 = vsub.s32 0, %v371
    %v373 = vrot.slane %v78, %v372
    %v374 = vlaneseq
    %v375 = vshrl.u32 %v374, 7
    %v376 = vsub.s32 1, %v375
    %v377 = vrot.slane %v78, %v376
    %v378 = vlaneseq
    %v379 = vshrl.u32 %v378, 7
    %v380 = vsub.s32 2, %v379
    %v381 = vrot.slane %v78, %v380
    %v382 = vlaneseq
    %v383 = vshrl.u32 %v382, 7
    %v384 = vsub.s32 3, %v383
    %v385 = vrot.slane %v78, %v384
    %v386 = vlaneseq
    %v387 = vshrl.u32 %v386, 7
    %v388 = vsub.s32 4, %v387
    %v389 = vrot.slane %v78, %v388
    %v587 = vunpack.c.l.b16 %v177
    %v588 = vunpack.c.h.b16 %v177
    %v589 = vunpack.c.l.b16 %v178
    %v590 = vunpack.c.h.b16 %v178
    %v591 = vunpack.c.l.b16 %v179
    %v592 = vunpack.c.l.b16 %v180
    %v593 = vunpack.c.h.b16 %v180
    %v594 = vunpack.c.l.b16 %v181
    %v595 = vunpack.c.h.b16 %v181
    %v596 = vunpack.c.l.b16 %v182
    %v597 = vunpack.c.l.b16 %v183
    %v598 = vunpack.c.h.b16 %v183
    %v599 = vunpack.c.l.b16 %v184
    %v600 = vunpack.c.h.b16 %v184
    %v601 = vunpack.c.l.b16 %v185
    %v602 = vunpack.c.l.b16 %v186
    %v603 = vunpack.c.h.b16 %v186
    %v604 = vunpack.c.l.b16 %v187
    %v605 = vunpack.c.h.b16 %v187
    %v606 = vunpack.c.l.b16 %v188
    %v607 = vunpack.c.l.b16 %v189
    %v608 = vunpack.c.h.b16 %v189
    %v609 = vunpack.c.l.b16 %v190
    %v610 = vunpack.c.h.b16 %v190
    %v611 = vunpack.c.l.b16 %v191
    %v612 = vunpack.c.l.b16 %v192
    %v613 = vunpack.c.h.b16 %v192
    %v614 = vunpack.c.l.b16 %v193
    %v615 = vunpack.c.h.b16 %v193
    %v616 = vunpack.c.l.b16 %v194
    %v617 = vunpack.c.l.b16 %v195
    %v618 = vunpack.c.h.b16 %v195
    %v619 = vunpack.c.l.b16 %v196
    %v620 = vunpack.c.h.b16 %v196
    %v621 = vunpack.c.l.b16 %v197
    %v622 = vunpack.c.l.b16 %v198
    %v623 = vunpack.c.h.b16 %v198
    %v624 = vunpack.c.l.b16 %v199
    %v625 = vunpack.c.h.b16 %v199
    %v626 = vunpack.c.l.b16 %v200
    %v627 = vunpack.c.l.b16 %v201
    %v628 = vunpack.c.h.b16 %v201
    %v629 = vunpack.c.l.b16 %v202
    %v630 = vunpack.c.h.b16 %v202
    %v631 = vunpack.c.l.b16 %v203
    %v632 = vunpack.c.l.b16 %v204
    %v633 = vunpack.c.h.b16 %v204
    %v634 = vunpack.c.l.b16 %v205
    %v635 = vunpack.c.h.b16 %v205
    %v636 = vunpack.c.l.b16 %v206
    %v637 = vunpack.c.l.b16 %v207
    %v638 = vunpack.c.h.b16 %v207
    %v639 = vunpack.c.l.b16 %v208
    %v640 = vunpack.c.h.b16 %v208
    %v641 = vunpack.c.l.b16 %v209
    %v642 = vunpack.c.l.b16 %v210
    %v643 = vunpack.c.h.b16 %v210
    %v644 = vunpack.c.l.b16 %v211
    %v645 = vunpack.c.h.b16 %v211
    %v646 = vunpack.c.l.b16 %v212
    %v647 = vunpack.c.l.b16 %v213
    %v648 = vunpack.c.h.b16 %v213
    %v649 = vunpack.c.l.b16 %v214
    %v650 = vunpack.c.h.b16 %v214
    %v651 = vunpack.c.l.b16 %v215
    %v652 = vunpack.c.l.b16 %v216
    %v653 = vunpack.c.h.b16 %v216
    %v654 = vunpack.c.l.b16 %v217
    %v655 = vunpack.c.h.b16 %v217
    %v656 = vunpack.c.l.b16 %v218
    %v657 = vunpack.c.l.b16 %v219
    %v658 = vunpack.c.h.b16 %v219
    %v659 = vunpack.c.l.b16 %v220
    %v660 = vunpack.c.h.b16 %v220
    %v661 = vunpack.c.l.b16 %v221
    %v662 = vunpack.c.l.b16 %v222
    %v663 = vunpack.c.h.b16 %v222
    %v664 = vunpack.c.l.b16 %v223
    %v665 = vunpack.c.h.b16 %v223
    %v666 = vunpack.c.l.b16 %v224
    %v667 = vunpack.c.l.b16 %v225
    %v668 = vunpack.c.h.b16 %v225
    %v669 = vunpack.c.l.b16 %v226
    %v670 = vunpack.c.h.b16 %v226
    %v671 = vunpack.c.l.b16 %v227
    %v672 = vunpack.c.l.b16 %v228
    %v673 = vunpack.c.h.b16 %v228
    %v674 = vunpack.c.l.b16 %v229
    %v675 = vunpack.c.h.b16 %v229
    %v676 = vunpack.c.l.b16 %v230
    %v677 = vunpack.c.l.b16 %v231
    %v678 = vunpack.c.h.b16 %v231
    %v679 = vunpack.c.l.b16 %v232
    %v680 = vunpack.c.h.b16 %v232
    %v681 = vunpack.c.l.b16 %v233
    %v682 = vunpack.c.l.b16 %v234
    %v683 = vunpack.c.h.b16 %v234
    %v684 = vunpack.c.l.b16 %v235
    %v685 = vunpack.c.h.b16 %v235
    %v686 = vunpack.c.l.b16 %v236
    %v687 = vunpack.c.l.b16 %v237
    %v688 = vunpack.c.h.b16 %v237
    %v689 = vunpack.c.l.b16 %v238
    %v690 = vunpack.c.h.b16 %v238
    %v691 = vunpack.c.l.b16 %v239
    %v692 = vunpack.c.l.b16 %v240
    %v693 = vunpack.c.h.b16 %v240
    %v694 = vunpack.c.l.b16 %v241
    %v695 = vunpack.c.h.b16 %v241
    %v696 = vunpack.c.l.b16 %v242
    %v697 = vunpack.c.l.b16 %v243
    %v698 = vunpack.c.h.b16 %v243
    %v699 = vunpack.c.l.b16 %v244
    %v700 = vunpack.c.h.b16 %v244
    %v701 = vunpack.c.l.b16 %v245
    %v702 = vunpack.c.l.b16 %v246
    %v703 = vunpack.c.h.b16 %v246
    %v704 = vunpack.c.l.b16 %v247
    %v705 = vunpack.c.h.b16 %v247
    %v706 = vunpack.c.l.b16 %v248
    %v707 = vunpack.c.l.b16 %v249
    %v708 = vunpack.c.h.b16 %v249
    %v709 = vunpack.c.l.b16 %v250
    %v710 = vunpack.c.h.b16 %v250
    %v711 = vunpack.c.l.b16 %v251
    %v712 = vunpack.c.l.b16 %v252
    %v713 = vunpack.c.h.b16 %v252
    %v714 = vunpack.c.l.b16 %v253
    %v715 = vunpack.c.h.b16 %v253
    %v716 = vunpack.c.l.b16 %v254
    %v717 = vunpack.c.l.b16 %v255
    %v718 = vunpack.c.h.b16 %v255
    %v719 = vunpack.c.l.b16 %v256
    %v720 = vunpack.c.h.b16 %v256
    %v721 = vunpack.c.l.b16 %v257
    %v722 = vunpack.c.l.b16 %v258
    %v723 = vunpack.c.h.b16 %v258
    %v724 = vunpack.c.l.b16 %v259
    %v725 = vunpack.c.h.b16 %v259
    %v726 = vunpack.c.l.b16 %v260
    %v727 = vunpack.c.l.b16 %v261
    %v728 = vunpack.c.h.b16 %v261
    %v729 = vunpack.c.l.b16 %v262
    %v730 = vunpack.c.h.b16 %v262
    %v731 = vunpack.c.l.b16 %v263
    %v732 = vunpack.c.l.b16 %v264
    %v733 = vunpack.c.h.b16 %v264
    %v734 = vunpack.c.l.b16 %v265
    %v735 = vunpack.c.h.b16 %v265
    %v736 = vunpack.c.l.b16 %v266
    %v737 = vunpack.c.l.b16 %v267
    %v738 = vunpack.c.h.b16 %v267
    %v739 = vunpack.c.l.b16 %v268
    %v740 = vunpack.c.h.b16 %v268
    %v741 = vunpack.c.l.b16 %v269
    %v742 = vunpack.c.l.b16 %v270
    %v743 = vunpack.c.h.b16 %v270
    %v744 = vunpack.c.l.b16 %v271
    %v745 = vunpack.c.h.b16 %v271
    %v746 = vunpack.c.l.b16 %v272
    %v747 = vunpack.c.l.b16 %v273
    %v748 = vunpack.c.h.b16 %v273
    %v749 = vunpack.c.l.b16 %v274
    %v750 = vunpack.c.h.b16 %v274
    %v751 = vunpack.c.l.b16 %v275
    %v752 = vunpack.c.l.b16 %v276
    %v753 = vunpack.c.h.b16 %v276
    %v754 = vunpack.c.l.b16 %v277
    %v755 = vunpack.c.h.b16 %v277
    %v756 = vunpack.c.l.b16 %v278
    %v757 = vunpack.c.l.b16 %v279
    %v758 = vunpack.c.h.b16 %v279
    %v759 = vunpack.c.l.b16 %v280
    %v760 = vunpack.c.h.b16 %v280
    %v761 = vunpack.c.l.b16 %v281
    %v762 = vunpack.c.l.b16 %v282
    %v763 = vunpack.c.h.b16 %v282
    %v764 = vunpack.c.l.b16 %v283
    %v765 = vunpack.c.h.b16 %v283
    %v766 = vunpack.c.l.b16 %v284
    %v767 = vunpack.c.l.b16 %v285
    %v768 = vunpack.c.h.b16 %v285
    %v769 = vunpack.c.l.b16 %v286
    %v770 = vunpack.c.h.b16 %v286
    %v771 = vunpack.c.l.b16 %v287
    %v772 = vunpack.c.l.b16 %v288
    %v773 = vunpack.c.h.b16 %v288
    %v774 = vunpack.c.l.b16 %v289
    %v775 = vunpack.c.h.b16 %v289
    %v776 = vunpack.c.l.b16 %v290
    %v777 = vunpack.c.l.b16 %v291
    %v778 = vunpack.c.h.b16 %v291
    %v779 = vunpack.c.l.b16 %v292
    %v780 = vunpack.c.h.b16 %v292
    %v781 = vunpack.c.l.b16 %v293
    %v782 = vunpack.c.l.b16 %v294
    %v783 = vunpack.c.h.b16 %v294
    %v784 = vunpack.c.l.b16 %v295
    %v785 = vunpack.c.h.b16 %v295
    %v786 = vunpack.c.l.b16 %v296
    %v787 = vunpack.c.l.b16 %v297
    %v788 = vunpack.c.h.b16 %v297
    %v789 = vunpack.c.l.b16 %v298
    %v790 = vunpack.c.h.b16 %v298
    %v791 = vunpack.c.l.b16 %v299
    %v792 = vunpack.c.l.b16 %v300
    %v793 = vunpack.c.h.b16 %v300
    %v794 = vunpack.c.l.b16 %v301
    %v795 = vunpack.c.h.b16 %v301
    %v796 = vunpack.c.l.b16 %v302
    %v797 = vunpack.c.l.b16 %v303
    %v798 = vunpack.c.h.b16 %v303
    %v799 = vunpack.c.l.b16 %v304
    %v800 = vunpack.c.h.b16 %v304
    %v801 = vunpack.c.l.b16 %v305
    %v802 = vunpack.c.l.b16 %v306
    %v803 = vunpack.c.h.b16 %v306
    %v804 = vunpack.c.l.b16 %v307
    %v805 = vunpack.c.h.b16 %v307
    %v806 = vunpack.c.l.b16 %v308
    %v807 = vunpack.c.l.b16 %v309
    %v808 = vunpack.c.h.b16 %v309
    %v809 = vunpack.c.l.b16 %v310
    %v810 = vunpack.c.h.b16 %v310
    %v811 = vunpack.c.l.b16 %v311
    %v812 = vunpack.c.l.b16 %v312
    %v813 = vunpack.c.h.b16 %v312
    %v814 = vunpack.c.l.b16 %v313
    %v815 = vunpack.c.h.b16 %v313
    %v816 = vunpack.c.l.b16 %v314
    %v817 = vunpack.c.l.b16 %v315
    %v818 = vunpack.c.h.b16 %v315
    %v819 = vunpack.c.l.b16 %v316
    %v820 = vunpack.c.h.b16 %v316
    %v821 = vunpack.c.l.b16 %v317
    %v822 = vunpack.c.l.b16 %v318
    %v823 = vunpack.c.h.b16 %v318
    %v824 = vunpack.c.l.b16 %v319
    %v825 = vunpack.c.h.b16 %v319
    %v826 = vunpack.c.l.b16 %v320
    %v827 = vunpack.c.l.b16 %v321
    %v828 = vunpack.c.h.b16 %v321
    %v829 = vunpack.c.l.b16 %v322
    %v830 = vunpack.c.h.b16 %v322
    %v831 = vunpack.c.l.b16 %v323
    %v832 = vunpack.c.l.b16 %v324
    %v833 = vunpack.c.h.b16 %v324
    %v834 = vunpack.c.l.b16 %v325
    %v835 = vunpack.c.h.b16 %v325
    %v836 = vunpack.c.l.b16 %v326
    %v837 = vunpack.c.l.b16 %v327
    %v838 = vunpack.c.h.b16 %v327
    %v839 = vunpack.c.l.b16 %v328
    %v840 = vunpack.c.h.b16 %v328
    %v841 = vunpack.c.l.b16 %v329
    %v842 = vunpack.c.l.b16 %v330
    %v843 = vunpack.c.h.b16 %v330
    %v844 = vunpack.c.l.b16 %v331
    %v845 = vunpack.c.h.b16 %v331
    %v846 = vunpack.c.l.b16 %v332
    %v847 = vunpack.c.l.b16 %v333
    %v848 = vunpack.c.h.b16 %v333
    %v849 = vunpack.c.l.b16 %v334
    %v850 = vunpack.c.h.b16 %v334
    %v851 = vunpack.c.l.b16 %v335
    %v852 = vunpack.c.l.b16 %v336
    %v853 = vunpack.c.h.b16 %v336
    %v854 = vunpack.c.l.b16 %v337
    %v855 = vunpack.c.h.b16 %v337
    %v856 = vunpack.c.l.b16 %v338
    %v857 = vunpack.c.l.b16 %v339
    %v858 = vunpack.c.h.b16 %v339
    %v859 = vunpack.c.l.b16 %v340
    %v860 = vunpack.c.h.b16 %v340
    %v861 = vunpack.c.l.b16 %v341
    %v862 = vunpack.c.l.b16 %v342
    %v863 = vunpack.c.h.b16 %v342
    %v864 = vunpack.c.l.b16 %v343
    %v865 = vunpack.c.h.b16 %v343
    %v866 = vunpack.c.l.b16 %v344
    %v867 = vunpack.c.l.b16 %v345
    %v868 = vunpack.c.h.b16 %v345
    %v869 = vunpack.c.l.b16 %v346
    %v870 = vunpack.c.h.b16 %v346
    %v871 = vunpack.c.l.b16 %v347
    %v872 = vunpack.c.l.b16 %v348
    %v873 = vunpack.c.h.b16 %v348
    %v874 = vunpack.c.l.b16 %v349
    %v875 = vunpack.c.h.b16 %v349
    %v876 = vunpack.c.l.b16 %v350
    %v877 = vunpack.c.l.b16 %v351
    %v878 = vunpack.c.h.b16 %v351
    %v879 = vunpack.c.l.b16 %v352
    %v880 = vunpack.c.h.b16 %v352
    %v881 = vunpack.c.l.b16 %v353
    %v882 = vunpack.c.l.b16 %v354
    %v883 = vunpack.c.h.b16 %v354
    %v884 = vunpack.c.l.b16 %v355
    %v885 = vunpack.c.h.b16 %v355
    %v886 = vunpack.c.l.b16 %v356
    %v887 = vunpack.c.l.b16 %v357
    %v888 = vunpack.c.h.b16 %v357
    %v889 = vunpack.c.l.b16 %v358
    %v890 = vunpack.c.h.b16 %v358
    %v891 = vunpack.c.l.b16 %v359
    %v892 = vunpack.c.l.b16 %v360
    %v893 = vunpack.c.h.b16 %v360
    %v894 = vunpack.c.l.b16 %v361
    %v895 = vunpack.c.h.b16 %v361
    %v896 = vunpack.c.l.b16 %v362
    %v897 = vunpack.c.l.b16 %v363
    %v898 = vunpack.c.h.b16 %v363
    %v899 = vunpack.c.l.b16 %v364
    %v900 = vunpack.c.h.b16 %v364
    %v901 = vunpack.c.l.b16 %v365
    %v902 = vunpack.c.l.b16 %v366
    %v903 = vunpack.c.h.b16 %v366
    %v904 = vunpack.c.l.b16 %v367
    %v905 = vunpack.c.h.b16 %v367
    %v906 = vunpack.c.l.b16 %v368
    %v907 = vpack.c.b16 %v592, %v587
    %v908 = vpack.c.b16 %v593, %v588
    %v909 = vpack.c.b16 %v594, %v589
    %v910 = vpack.c.b16 %v595, %v590
    %v911 = vpack.c.b16 %v596, %v591
    %v912 = vpack.c.b16 %v602, %v597
    %v913 = vpack.c.b16 %v603, %v598
    %v914 = vpack.c.b16 %v604, %v599
    %v915 = vpack.c.b16 %v605, %v600
    %v916 = vpack.c.b16 %v606, %v601
    %v917 = vpack.c.b16 %v612, %v607
    %v918 = vpack.c.b16 %v613, %v608
    %v919 = vpack.c.b16 %v614, %v609
    %v920 = vpack.c.b16 %v615, %v610
    %v921 = vpack.c.b16 %v616, %v611
    %v922 = vpack.c.b16 %v622, %v617
    %v923 = vpack.c.b16 %v623, %v618
    %v924 = vpack.c.b16 %v624, %v619
    %v925 = vpack.c.b16 %v625, %v620
    %v926 = vpack.c.b16 %v626, %v621
    %v927 = vpack.c.b16 %v632, %v627
    %v928 = vpack.c.b16 %v633, %v628
    %v929 = vpack.c.b16 %v634, %v629
    %v930 = vpack.c.b16 %v635, %v630
    %v931 = vpack.c.b16 %v636, %v631
    %v932 = vpack.c.b16 %v642, %v637
    %v933 = vpack.c.b16 %v643, %v638
    %v934 = vpack.c.b16 %v644, %v639
    %v935 = vpack.c.b16 %v645, %v640
    %v936 = vpack.c.b16 %v646, %v641
    %v937 = vpack.c.b16 %v652, %v647
    %v938 = vpack.c.b16 %v653, %v648
    %v939 = vpack.c.b16 %v654, %v649
    %v940 = vpack.c.b16 %v655, %v650
    %v941 = vpack.c.b16 %v656, %v651
    %v942 = vpack.c.b16 %v662, %v657
    %v943 = vpack.c.b16 %v663, %v658
    %v944 = vpack.c.b16 %v664, %v659
    %v945 = vpack.c.b16 %v665, %v660
    %v946 = vpack.c.b16 %v666, %v661
    %v947 = vpack.c.b16 %v672, %v667
    %v948 = vpack.c.b16 %v673, %v668
    %v949 = vpack.c.b16 %v674, %v669
    %v950 = vpack.c.b16 %v675, %v670
    %v951 = vpack.c.b16 %v676, %v671
    %v952 = vpack.c.b16 %v682, %v677
    %v953 = vpack.c.b16 %v683, %v678
    %v954 = vpack.c.b16 %v684, %v679
    %v955 = vpack.c.b16 %v685, %v680
    %v956 = vpack.c.b16 %v686, %v681
    %v957 = vpack.c.b16 %v692, %v687
    %v958 = vpack.c.b16 %v693, %v688
    %v959 = vpack.c.b16 %v694, %v689
    %v960 = vpack.c.b16 %v695, %v690
    %v961 = vpack.c.b16 %v696, %v691
    %v962 = vpack.c.b16 %v702, %v697
    %v963 = vpack.c.b16 %v703, %v698
    %v964 = vpack.c.b16 %v704, %v699
    %v965 = vpack.c.b16 %v705, %v700
    %v966 = vpack.c.b16 %v706, %v701
    %v967 = vpack.c.b16 %v712, %v707
    %v968 = vpack.c.b16 %v713, %v708
    %v969 = vpack.c.b16 %v714, %v709
    %v970 = vpack.c.b16 %v715, %v710
    %v971 = vpack.c.b16 %v716, %v711
    %v972 = vpack.c.b16 %v722, %v717
    %v973 = vpack.c.b16 %v723, %v718
    %v974 = vpack.c.b16 %v724, %v719
    %v975 = vpack.c.b16 %v725, %v720
    %v976 = vpack.c.b16 %v726, %v721
    %v977 = vpack.c.b16 %v732, %v727
    %v978 = vpack.c.b16 %v733, %v728
    %v979 = vpack.c.b16 %v734, %v729
    %v980 = vpack.c.b16 %v735, %v730
    %v981 = vpack.c.b16 %v736, %v731
    %v982 = vpack.c.b16 %v742, %v737
    %v983 = vpack.c.b16 %v743, %v738
    %v984 = vpack.c.b16 %v744, %v739
    %v985 = vpack.c.b16 %v745, %v740
    %v986 = vpack.c.b16 %v746, %v741
    %v987 = vpack.c.b16 %v752, %v747
    %v988 = vpack.c.b16 %v753, %v748
    %v989 = vpack.c.b16 %v754, %v749
    %v990 = vpack.c.b16 %v755, %v750
    %v991 = vpack.c.b16 %v756, %v751
    %v992 = vpack.c.b16 %v762, %v757
    %v993 = vpack.c.b16 %v763, %v758
    %v994 = vpack.c.b16 %v764, %v759
    %v995 = vpack.c.b16 %v765, %v760
    %v996 = vpack.c.b16 %v766, %v761
    %v997 = vpack.c.b16 %v772, %v767
    %v998 = vpack.c.b16 %v773, %v768
    %v999 = vpack.c.b16 %v774, %v769
    %v1000 = vpack.c.b16 %v775, %v770
    %v1001 = vpack.c.b16 %v776, %v771
    %v1002 = vpack.c.b16 %v782, %v777
    %v1003 = vpack.c.b16 %v783, %v778
    %v1004 = vpack.c.b16 %v784, %v779
    %v1005 = vpack.c.b16 %v785, %v780
    %v1006 = vpack.c.b16 %v786, %v781
    %v1007 = vpack.c.b16 %v792, %v787
    %v1008 = vpack.c.b16 %v793, %v788
    %v1009 = vpack.c.b16 %v794, %v789
    %v1010 = vpack.c.b16 %v795, %v790
    %v1011 = vpack.c.b16 %v796, %v791
    %v1012 = vpack.c.b16 %v802, %v797
    %v1013 = vpack.c.b16 %v803, %v798
    %v1014 = vpack.c.b16 %v804, %v799
    %v1015 = vpack.c.b16 %v805, %v800
    %v1016 = vpack.c.b16 %v806, %v801
    %v1017 = vpack.c.b16 %v812, %v807
    %v1018 = vpack.c.b16 %v813, %v808
    %v1019 = vpack.c.b16 %v814, %v809
    %v1020 = vpack.c.b16 %v815, %v810
    %v1021 = vpack.c.b16 %v816, %v811
    %v1022 = vpack.c.b16 %v822, %v817
    %v1023 = vpack.c.b16 %v823, %v818
    %v1024 = vpack.c.b16 %v824, %v819
    %v1025 = vpack.c.b16 %v825, %v820
    %v1026 = vpack.c.b16 %v826, %v821
    %v1027 = vpack.c.b16 %v832, %v827
    %v1028 = vpack.c.b16 %v833, %v828
    %v1029 = vpack.c.b16 %v834, %v829
    %v1030 = vpack.c.b16 %v835, %v830
    %v1031 = vpack.c.b16 %v836, %v831
    %v1032 = vpack.c.b16 %v842, %v837
    %v1033 = vpack.c.b16 %v843, %v838
    %v1034 = vpack.c.b16 %v844, %v839
    %v1035 = vpack.c.b16 %v845, %v840
    %v1036 = vpack.c.b16 %v846, %v841
    %v1037 = vpack.c.b16 %v852, %v847
    %v1038 = vpack.c.b16 %v853, %v848
    %v1039 = vpack.c.b16 %v854, %v849
    %v1040 = vpack.c.b16 %v855, %v850
    %v1041 = vpack.c.b16 %v856, %v851
    %v1042 = vpack.c.b16 %v862, %v857
    %v1043 = vpack.c.b16 %v863, %v858
    %v1044 = vpack.c.b16 %v864, %v859
    %v1045 = vpack.c.b16 %v865, %v860
    %v1046 = vpack.c.b16 %v866, %v861
    %v1047 = vpack.c.b16 %v872, %v867
    %v1048 = vpack.c.b16 %v873, %v868
    %v1049 = vpack.c.b16 %v874, %v869
    %v1050 = vpack.c.b16 %v875, %v870
    %v1051 = vpack.c.b16 %v876, %v871
    %v1052 = vpack.c.b16 %v882, %v877
    %v1053 = vpack.c.b16 %v883, %v878
    %v1054 = vpack.c.b16 %v884, %v879
    %v1055 = vpack.c.b16 %v885, %v880
    %v1056 = vpack.c.b16 %v886, %v881
    %v1057 = vpack.c.b16 %v892, %v887
    %v1058 = vpack.c.b16 %v893, %v888
    %v1059 = vpack.c.b16 %v894, %v889
    %v1060 = vpack.c.b16 %v895, %v890
    %v1061 = vpack.c.b16 %v896, %v891
    %v1062 = vpack.c.b16 %v902, %v897
    %v1063 = vpack.c.b16 %v903, %v898
    %v1064 = vpack.c.b16 %v904, %v899
    %v1065 = vpack.c.b16 %v905, %v900
    %v1066 = vpack.c.b16 %v906, %v901
    %1227 = vmatprep.subr.bf16.mxu0 %v943
    %1228 = vmatpush1.bf16.msra.mxu0 %v942
    %1229 = vmatprep.subr.bf16.mxu0 %v938
    %1230 = vmatpush1.bf16.msra.mxu0 %v937
    %1231 = vmatprep.subr.bf16.mxu0 %v933
    %1232 = vmatpush1.bf16.msra.mxu0 %v932
    %1233 = vmatprep.subr.bf16.mxu0 %v928
    %1234 = vmatpush1.bf16.msra.mxu0 %v927
    %1235 = vmatprep.subr.bf16.mxu0 %v923
    %1236 = vmatpush1.bf16.msra.mxu0 %v922
    %1237 = vmatprep.subr.bf16.mxu0 %v918
    %1238 = vmatpush1.bf16.msra.mxu0 %v917
    %1239 = vmatprep.subr.bf16.mxu0 %v913
    %1240 = vmatpush1.bf16.msra.mxu0 %v912
    %1241 = vmatprep.subr.bf16.mxu0 %v908
    %1242 = vmatpush1.bf16.msra.mxu0 %v907
    %1243 = vmatprep.subr.bf16.mxu0 %v983
    %1244 = vmatpush2.bf16.msra.mxu0 %v982
    %1245 = vmatprep.subr.bf16.mxu0 %v978
    %1246 = vmatpush2.bf16.msra.mxu0 %v977
    %1247 = vmatprep.subr.bf16.mxu0 %v973
    %1248 = vmatpush2.bf16.msra.mxu0 %v972
    %1249 = vmatprep.subr.bf16.mxu0 %v968
    %1250 = vmatpush2.bf16.msra.mxu0 %v967
    %1251 = vmatprep.subr.bf16.mxu0 %v963
    %1252 = vmatpush2.bf16.msra.mxu0 %v962
    %1253 = vmatprep.subr.bf16.mxu0 %v958
    %1254 = vmatpush2.bf16.msra.mxu0 %v957
    %1255 = vmatprep.subr.bf16.mxu0 %v953
    %1256 = vmatpush2.bf16.msra.mxu0 %v952
    %1257 = vmatprep.subr.bf16.mxu0 %v948
    %1258 = vmatpush2.bf16.msra.mxu0 %v947
    %1259 = vmatprep.mubr.bf16.mxu0 %v174
    %1260 = vmatmul.mubr.bf16.gmra.mxu0 %v173
    %v1261 = vpop.f32.mrf.mxu0
    %v1262 = vadd.f32 %v373, %v1261
    %v1263 = vpop.f32.mrf.mxu0
    %v1264 = vadd.f32 %v377, %v1263
    %v1265 = vpop.f32.mrf.mxu0
    %v1266 = vpop.f32.mrf.mxu0
    %1267 = vdwg.mxu0
    %1268 = vmatprep.subr.bf16.mxu0 %v1023
    %1269 = vmatpush1.bf16.msra.mxu0 %v1022
    %1270 = vmatprep.subr.bf16.mxu0 %v1018
    %1271 = vmatpush1.bf16.msra.mxu0 %v1017
    %1272 = vmatprep.subr.bf16.mxu0 %v1013
    %1273 = vmatpush1.bf16.msra.mxu0 %v1012
    %1274 = vmatprep.subr.bf16.mxu0 %v1008
    %1275 = vmatpush1.bf16.msra.mxu0 %v1007
    %1276 = vmatprep.subr.bf16.mxu0 %v1003
    %1277 = vmatpush1.bf16.msra.mxu0 %v1002
    %1278 = vmatprep.subr.bf16.mxu0 %v998
    %1279 = vmatpush1.bf16.msra.mxu0 %v997
    %1280 = vmatprep.subr.bf16.mxu0 %v993
    %1281 = vmatpush1.bf16.msra.mxu0 %v992
    %1282 = vmatprep.subr.bf16.mxu0 %v988
    %1283 = vmatpush1.bf16.msra.mxu0 %v987
    %1284 = vmatprep.subr.bf16.mxu0 %v1063
    %1285 = vmatpush2.bf16.msra.mxu0 %v1062
    %1286 = vmatprep.subr.bf16.mxu0 %v1058
    %1287 = vmatpush2.bf16.msra.mxu0 %v1057
    %1288 = vmatprep.subr.bf16.mxu0 %v1053
    %1289 = vmatpush2.bf16.msra.mxu0 %v1052
    %1290 = vmatprep.subr.bf16.mxu0 %v1048
    %1291 = vmatpush2.bf16.msra.mxu0 %v1047
    %1292 = vmatprep.subr.bf16.mxu0 %v1043
    %1293 = vmatpush2.bf16.msra.mxu0 %v1042
    %1294 = vmatprep.subr.bf16.mxu0 %v1038
    %1295 = vmatpush2.bf16.msra.mxu0 %v1037
    %1296 = vmatprep.subr.bf16.mxu0 %v1033
    %1297 = vmatpush2.bf16.msra.mxu0 %v1032
    %1298 = vmatprep.subr.bf16.mxu0 %v1028
    %1299 = vmatpush2.bf16.msra.mxu0 %v1027
    %1300 = vmatprep.mubr.bf16.mxu0 %v176
    %1301 = vmatmul.mubr.bf16.gmra.mxu0 %v175
    %v1302 = vpop.f32.mrf.mxu0
    %v1303 = vadd.f32 %v1262, %v1302
    %v1304 = vpop.f32.mrf.mxu0
    %v1305 = vadd.f32 %v1264, %v1304
    %v1306 = vpop.f32.mrf.mxu0
    %v1307 = vpop.f32.mrf.mxu0
    %1308 = vdwg.mxu0
    %1309 = vmatprep.subr.bf16.mxu0 %v945
    %1310 = vmatpush1.bf16.msra.mxu0 %v944
    %1311 = vmatprep.subr.bf16.mxu0 %v940
    %1312 = vmatpush1.bf16.msra.mxu0 %v939
    %1313 = vmatprep.subr.bf16.mxu0 %v935
    %1314 = vmatpush1.bf16.msra.mxu0 %v934
    %1315 = vmatprep.subr.bf16.mxu0 %v930
    %1316 = vmatpush1.bf16.msra.mxu0 %v929
    %1317 = vmatprep.subr.bf16.mxu0 %v925
    %1318 = vmatpush1.bf16.msra.mxu0 %v924
    %1319 = vmatprep.subr.bf16.mxu0 %v920
    %1320 = vmatpush1.bf16.msra.mxu0 %v919
    %1321 = vmatprep.subr.bf16.mxu0 %v915
    %1322 = vmatpush1.bf16.msra.mxu0 %v914
    %1323 = vmatprep.subr.bf16.mxu0 %v910
    %1324 = vmatpush1.bf16.msra.mxu0 %v909
    %1325 = vmatprep.subr.bf16.mxu0 %v985
    %1326 = vmatpush2.bf16.msra.mxu0 %v984
    %1327 = vmatprep.subr.bf16.mxu0 %v980
    %1328 = vmatpush2.bf16.msra.mxu0 %v979
    %1329 = vmatprep.subr.bf16.mxu0 %v975
    %1330 = vmatpush2.bf16.msra.mxu0 %v974
    %1331 = vmatprep.subr.bf16.mxu0 %v970
    %1332 = vmatpush2.bf16.msra.mxu0 %v969
    %1333 = vmatprep.subr.bf16.mxu0 %v965
    %1334 = vmatpush2.bf16.msra.mxu0 %v964
    %1335 = vmatprep.subr.bf16.mxu0 %v960
    %1336 = vmatpush2.bf16.msra.mxu0 %v959
    %1337 = vmatprep.subr.bf16.mxu0 %v955
    %1338 = vmatpush2.bf16.msra.mxu0 %v954
    %1339 = vmatprep.subr.bf16.mxu0 %v950
    %1340 = vmatpush2.bf16.msra.mxu0 %v949
    %1341 = vmatprep.mubr.bf16.mxu0 %v174
    %1342 = vmatmul.mubr.bf16.gmra.mxu0 %v173
    %v1343 = vpop.f32.mrf.mxu0
    %v1344 = vadd.f32 %v381, %v1343
    %v1345 = vpop.f32.mrf.mxu0
    %v1346 = vadd.f32 %v385, %v1345
    %v1347 = vpop.f32.mrf.mxu0
    %v1348 = vpop.f32.mrf.mxu0
    %1349 = vdwg.mxu0
    %1350 = vmatprep.subr.bf16.mxu0 %v1025
    %1351 = vmatpush1.bf16.msra.mxu0 %v1024
    %1352 = vmatprep.subr.bf16.mxu0 %v1020
    %1353 = vmatpush1.bf16.msra.mxu0 %v1019
    %1354 = vmatprep.subr.bf16.mxu0 %v1015
    %1355 = vmatpush1.bf16.msra.mxu0 %v1014
    %1356 = vmatprep.subr.bf16.mxu0 %v1010
    %1357 = vmatpush1.bf16.msra.mxu0 %v1009
    %1358 = vmatprep.subr.bf16.mxu0 %v1005
    %1359 = vmatpush1.bf16.msra.mxu0 %v1004
    %1360 = vmatprep.subr.bf16.mxu0 %v1000
    %1361 = vmatpush1.bf16.msra.mxu0 %v999
    %1362 = vmatprep.subr.bf16.mxu0 %v995
    %1363 = vmatpush1.bf16.msra.mxu0 %v994
    %1364 = vmatprep.subr.bf16.mxu0 %v990
    %1365 = vmatpush1.bf16.msra.mxu0 %v989
    %1366 = vmatprep.subr.bf16.mxu0 %v1065
    %1367 = vmatpush2.bf16.msra.mxu0 %v1064
    %1368 = vmatprep.subr.bf16.mxu0 %v1060
    %1369 = vmatpush2.bf16.msra.mxu0 %v1059
    %1370 = vmatprep.subr.bf16.mxu0 %v1055
    %1371 = vmatpush2.bf16.msra.mxu0 %v1054
    %1372 = vmatprep.subr.bf16.mxu0 %v1050
    %1373 = vmatpush2.bf16.msra.mxu0 %v1049
    %1374 = vmatprep.subr.bf16.mxu0 %v1045
    %1375 = vmatpush2.bf16.msra.mxu0 %v1044
    %1376 = vmatprep.subr.bf16.mxu0 %v1040
    %1377 = vmatpush2.bf16.msra.mxu0 %v1039
    %1378 = vmatprep.subr.bf16.mxu0 %v1035
    %1379 = vmatpush2.bf16.msra.mxu0 %v1034
    %1380 = vmatprep.subr.bf16.mxu0 %v1030
    %1381 = vmatpush2.bf16.msra.mxu0 %v1029
    %1382 = vmatprep.mubr.bf16.mxu0 %v176
    %1383 = vmatmul.mubr.bf16.gmra.mxu0 %v175
    %v1384 = vpop.f32.mrf.mxu0
    %v1385 = vadd.f32 %v1344, %v1384
    %v1386 = vpop.f32.mrf.mxu0
    %v1387 = vadd.f32 %v1346, %v1386
    %v1388 = vpop.f32.mrf.mxu0
    %v1389 = vpop.f32.mrf.mxu0
    %1390 = vdwg.mxu0
    %1391 = vmatprep.subr.bf16.mxu0 0
    %1392 = vmatpush1.bf16.msra.mxu0 %v946
    %1393 = vmatprep.subr.bf16.mxu0 0
    %1394 = vmatpush1.bf16.msra.mxu0 %v941
    %1395 = vmatprep.subr.bf16.mxu0 0
    %1396 = vmatpush1.bf16.msra.mxu0 %v936
    %1397 = vmatprep.subr.bf16.mxu0 0
    %1398 = vmatpush1.bf16.msra.mxu0 %v931
    %1399 = vmatprep.subr.bf16.mxu0 0
    %1400 = vmatpush1.bf16.msra.mxu0 %v926
    %1401 = vmatprep.subr.bf16.mxu0 0
    %1402 = vmatpush1.bf16.msra.mxu0 %v921
    %1403 = vmatprep.subr.bf16.mxu0 0
    %1404 = vmatpush1.bf16.msra.mxu0 %v916
    %1405 = vmatprep.subr.bf16.mxu0 0
    %1406 = vmatpush1.bf16.msra.mxu0 %v911
    %1407 = vmatprep.subr.bf16.mxu0 0
    %1408 = vmatpush2.bf16.msra.mxu0 %v986
    %1409 = vmatprep.subr.bf16.mxu0 0
    %1410 = vmatpush2.bf16.msra.mxu0 %v981
    %1411 = vmatprep.subr.bf16.mxu0 0
    %1412 = vmatpush2.bf16.msra.mxu0 %v976
    %1413 = vmatprep.subr.bf16.mxu0 0
    %1414 = vmatpush2.bf16.msra.mxu0 %v971
    %1415 = vmatprep.subr.bf16.mxu0 0
    %1416 = vmatpush2.bf16.msra.mxu0 %v966
    %1417 = vmatprep.subr.bf16.mxu0 0
    %1418 = vmatpush2.bf16.msra.mxu0 %v961
    %1419 = vmatprep.subr.bf16.mxu0 0
    %1420 = vmatpush2.bf16.msra.mxu0 %v956
    %1421 = vmatprep.subr.bf16.mxu0 0
    %1422 = vmatpush2.bf16.msra.mxu0 %v951
    %1423 = vmatprep.mubr.bf16.mxu0 %v174
    %1424 = vmatmul.mubr.bf16.gmra.mxu0 %v173
    %v1425 = vpop.f32.mrf.mxu0
    %v1426 = vadd.f32 %v389, %v1425
    %v1427 = vpop.f32.mrf.mxu0
    %v1428 = vpop.f32.mrf.mxu0
    %v1429 = vpop.f32.mrf.mxu0
    %1430 = vdwg.mxu0
    %1431 = vmatprep.subr.bf16.mxu0 0
    %1432 = vmatpush1.bf16.msra.mxu0 %v1026
    %1433 = vmatprep.subr.bf16.mxu0 0
    %1434 = vmatpush1.bf16.msra.mxu0 %v1021
    %1435 = vmatprep.subr.bf16.mxu0 0
    %1436 = vmatpush1.bf16.msra.mxu0 %v1016
    %1437 = vmatprep.subr.bf16.mxu0 0
    %1438 = vmatpush1.bf16.msra.mxu0 %v1011
    %1439 = vmatprep.subr.bf16.mxu0 0
    %1440 = vmatpush1.bf16.msra.mxu0 %v1006
    %1441 = vmatprep.subr.bf16.mxu0 0
    %1442 = vmatpush1.bf16.msra.mxu0 %v1001
    %1443 = vmatprep.subr.bf16.mxu0 0
    %1444 = vmatpush1.bf16.msra.mxu0 %v996
    %1445 = vmatprep.subr.bf16.mxu0 0
    %1446 = vmatpush1.bf16.msra.mxu0 %v991
    %1447 = vmatprep.subr.bf16.mxu0 0
    %1448 = vmatpush2.bf16.msra.mxu0 %v1066
    %1449 = vmatprep.subr.bf16.mxu0 0
    %1450 = vmatpush2.bf16.msra.mxu0 %v1061
    %1451 = vmatprep.subr.bf16.mxu0 0
    %1452 = vmatpush2.bf16.msra.mxu0 %v1056
    %1453 = vmatprep.subr.bf16.mxu0 0
    %1454 = vmatpush2.bf16.msra.mxu0 %v1051
    %1455 = vmatprep.subr.bf16.mxu0 0
    %1456 = vmatpush2.bf16.msra.mxu0 %v1046
    %1457 = vmatprep.subr.bf16.mxu0 0
    %1458 = vmatpush2.bf16.msra.mxu0 %v1041
    %1459 = vmatprep.subr.bf16.mxu0 0
    %1460 = vmatpush2.bf16.msra.mxu0 %v1036
    %1461 = vmatprep.subr.bf16.mxu0 0
    %1462 = vmatpush2.bf16.msra.mxu0 %v1031
    %1463 = vmatprep.mubr.bf16.mxu0 %v176
    %1464 = vmatmul.mubr.bf16.gmra.mxu0 %v175
    %v1465 = vpop.f32.mrf.mxu0
    %v1466 = vadd.f32 %v1426, %v1465
    %v1467 = vpop.f32.mrf.mxu0
    %v1468 = vpop.f32.mrf.mxu0
    %v1469 = vpop.f32.mrf.mxu0
    %1470 = vdwg.mxu0
    %v1471 = vtanh.pop %v1303
    %v1472 = vtanh.pop %v1305
    %v1473 = vtanh.pop %v1385
    %v1474 = vtanh.pop %v1387
    %v1475 = vtanh.pop %v1466
    %v1476 = vpack.c.bf16 %v1471, %v1471
    %v1477 = vpack.c.bf16 %v1472, %v1472
    %v1478 = vpack.c.bf16 %v1473, %v1473
    %v1479 = vpack.c.bf16 %v1474, %v1474
    %v1480 = vpack.c.bf16 %v1475, %v1475
    %v1481 = vld [vmem:[#allocation6] sm:$0xff]
    %v1482 = vld [vmem:[#allocation6 + $0x8] sm:$0xff]
    %v1483 = vld [vmem:[#allocation6 + $0x10] sm:$0xff]
    %v1484 = vld [vmem:[#allocation6 + $0x18] sm:$0xff]
    %v1485 = vld [vmem:[#allocation6 + $0x20] sm:$0xff]
    %v1486 = vld [vmem:[#allocation6 + $0x28] sm:$0xff]
    %v1487 = vld [vmem:[#allocation6 + $0x30] sm:$0xff]
    %v1488 = vld [vmem:[#allocation6 + $0x38] sm:$0xff]
    %v1489 = vld [vmem:[#allocation6 + $0x40] sm:$0xff]
    %v1490 = vld [vmem:[#allocation6 + $0x48] sm:$0xff]
    %v1491 = vld [vmem:[#allocation6 + $0x50] sm:$0xff]
    %v1492 = vld [vmem:[#allocation6 + $0x58] sm:$0xff]
    %v1493 = vld [vmem:[#allocation6 + $0x60] sm:$0xff]
    %v1494 = vld [vmem:[#allocation6 + $0x68] sm:$0xff]
    %v1495 = vld [vmem:[#allocation6 + $0x70] sm:$0xff]
    %v1496 = vld [vmem:[#allocation6 + $0x78] sm:$0xff]
    %v1497 = vld [vmem:[#allocation6 + $0x80] sm:$0xff]
    %v1498 = vld [vmem:[#allocation6 + $0x88] sm:$0xff]
    %v1499 = vld [vmem:[#allocation6 + $0x90] sm:$0xff]
    %v1500 = vld [vmem:[#allocation6 + $0x98] sm:$0xff]
    %v1501 = vld [vmem:[#allocation6 + $0xa0] sm:$0xff]
    %v1502 = vld [vmem:[#allocation6 + $0xa8] sm:$0xff]
    %v1503 = vld [vmem:[#allocation6 + $0xb0] sm:$0xff]
    %v1504 = vld [vmem:[#allocation6 + $0xb8] sm:$0xff]
    %v1505 = vld [vmem:[#allocation6 + $0xc0] sm:$0xff]
    %v1506 = vld [vmem:[#allocation6 + $0xc8] sm:$0xff]
    %v1507 = vld [vmem:[#allocation6 + $0xd0] sm:$0xff]
    %v1508 = vld [vmem:[#allocation6 + $0xd8] sm:$0xff]
    %v1509 = vld [vmem:[#allocation6 + $0xe0] sm:$0xff]
    %v1510 = vld [vmem:[#allocation6 + $0xe8] sm:$0xff]
    %v1511 = vld [vmem:[#allocation6 + $0xf0] sm:$0xff]
    %v1512 = vld [vmem:[#allocation6 + $0xf8] sm:$0xff]
    %v1513 = vld [vmem:[#allocation6 + $0x100] sm:$0xff]
    %v1514 = vld [vmem:[#allocation6 + $0x108] sm:$0xff]
    %v1515 = vld [vmem:[#allocation6 + $0x110] sm:$0xff]
    %v1516 = vld [vmem:[#allocation6 + $0x118] sm:$0xff]
    %v1517 = vld [vmem:[#allocation6 + $0x120] sm:$0xff]
    %v1518 = vld [vmem:[#allocation6 + $0x128] sm:$0xff]
    %v1519 = vld [vmem:[#allocation6 + $0x130] sm:$0xff]
    %v1520 = vld [vmem:[#allocation6 + $0x138] sm:$0xff]
    %v1521 = vld [vmem:[#allocation6 + $0x140] sm:$0xff]
    %v1522 = vld [vmem:[#allocation6 + $0x148] sm:$0xff]
    %v1523 = vld [vmem:[#allocation6 + $0x150] sm:$0xff]
    %v1524 = vld [vmem:[#allocation6 + $0x158] sm:$0xff]
    %v1525 = vld [vmem:[#allocation6 + $0x160] sm:$0xff]
    %v1526 = vld [vmem:[#allocation6 + $0x168] sm:$0xff]
    %v1527 = vld [vmem:[#allocation6 + $0x170] sm:$0xff]
    %v1528 = vld [vmem:[#allocation6 + $0x178] sm:$0xff]
    %v1529 = vld [vmem:[#allocation6 + $0x180] sm:$0xff]
    %v1530 = vld [vmem:[#allocation6 + $0x188] sm:$0xff]
    %v1531 = vld [vmem:[#allocation6 + $0x190] sm:$0xff]
    %v1532 = vld [vmem:[#allocation6 + $0x198] sm:$0xff]
    %v1533 = vld [vmem:[#allocation6 + $0x1a0] sm:$0xff]
    %v1534 = vld [vmem:[#allocation6 + $0x1a8] sm:$0xff]
    %v1535 = vld [vmem:[#allocation6 + $0x1b0] sm:$0xff]
    %v1536 = vld [vmem:[#allocation6 + $0x1b8] sm:$0xff]
    %v1537 = vld [vmem:[#allocation6 + $0x1c0] sm:$0xff]
    %v1538 = vld [vmem:[#allocation6 + $0x1c8] sm:$0xff]
    %v1539 = vld [vmem:[#allocation6 + $0x1d0] sm:$0xff]
    %v1540 = vld [vmem:[#allocation6 + $0x1d8] sm:$0xff]
    %v1541 = vld [vmem:[#allocation6 + $0x1e0] sm:$0xff]
    %v1542 = vld [vmem:[#allocation6 + $0x1e8] sm:$0xff]
    %v1543 = vld [vmem:[#allocation6 + $0x1f0] sm:$0xff]
    %v1544 = vld [vmem:[#allocation6 + $0x1f8] sm:$0xff]
    %v1545 = vld [vmem:[#allocation6 + $0x200] sm:$0xff]
    %v1546 = vld [vmem:[#allocation6 + $0x208] sm:$0xff]
    %v1547 = vld [vmem:[#allocation6 + $0x210] sm:$0xff]
    %v1548 = vld [vmem:[#allocation6 + $0x218] sm:$0xff]
    %v1549 = vld [vmem:[#allocation6 + $0x220] sm:$0xff]
    %v1550 = vld [vmem:[#allocation6 + $0x228] sm:$0xff]
    %v1551 = vld [vmem:[#allocation6 + $0x230] sm:$0xff]
    %v1552 = vld [vmem:[#allocation6 + $0x238] sm:$0xff]
    %v1553 = vld [vmem:[#allocation6 + $0x240] sm:$0xff]
    %v1554 = vld [vmem:[#allocation6 + $0x248] sm:$0xff]
    %v1555 = vld [vmem:[#allocation6 + $0x250] sm:$0xff]
    %v1556 = vld [vmem:[#allocation6 + $0x258] sm:$0xff]
    %v1557 = vld [vmem:[#allocation6 + $0x260] sm:$0xff]
    %v1558 = vld [vmem:[#allocation6 + $0x268] sm:$0xff]
    %v1559 = vld [vmem:[#allocation6 + $0x270] sm:$0xff]
    %v1560 = vld [vmem:[#allocation6 + $0x278] sm:$0xff]
    %v1561 = vld [vmem:[#allocation6 + $0x280] sm:$0xff]
    %v1562 = vld [vmem:[#allocation6 + $0x288] sm:$0xff]
    %v1563 = vld [vmem:[#allocation6 + $0x290] sm:$0xff]
    %v1564 = vld [vmem:[#allocation6 + $0x298] sm:$0xff]
    %v1565 = vld [vmem:[#allocation6 + $0x2a0] sm:$0xff]
    %v1566 = vld [vmem:[#allocation6 + $0x2a8] sm:$0xff]
    %v1567 = vld [vmem:[#allocation6 + $0x2b0] sm:$0xff]
    %v1568 = vld [vmem:[#allocation6 + $0x2b8] sm:$0xff]
    %v1569 = vld [vmem:[#allocation6 + $0x2c0] sm:$0xff]
    %v1570 = vld [vmem:[#allocation6 + $0x2c8] sm:$0xff]
    %v1571 = vld [vmem:[#allocation6 + $0x2d0] sm:$0xff]
    %v1572 = vld [vmem:[#allocation6 + $0x2d8] sm:$0xff]
    %v1573 = vld [vmem:[#allocation6 + $0x2e0] sm:$0xff]
    %v1574 = vld [vmem:[#allocation6 + $0x2e8] sm:$0xff]
    %v1575 = vld [vmem:[#allocation6 + $0x2f0] sm:$0xff]
    %v1576 = vld [vmem:[#allocation6 + $0x2f8] sm:$0xff]
    %v1577 = vld [vmem:[#allocation6 + $0x300] sm:$0xff]
    %v1578 = vld [vmem:[#allocation6 + $0x308] sm:$0xff]
    %v1579 = vld [vmem:[#allocation6 + $0x310] sm:$0xff]
    %v1580 = vld [vmem:[#allocation6 + $0x318] sm:$0xff]
    %v1581 = vld [vmem:[#allocation6 + $0x320] sm:$0xff]
    %v1582 = vld [vmem:[#allocation6 + $0x328] sm:$0xff]
    %v1583 = vld [vmem:[#allocation6 + $0x330] sm:$0xff]
    %v1584 = vld [vmem:[#allocation6 + $0x338] sm:$0xff]
    %v1585 = vld [vmem:[#allocation6 + $0x340] sm:$0xff]
    %v1586 = vld [vmem:[#allocation6 + $0x348] sm:$0xff]
    %v1587 = vld [vmem:[#allocation6 + $0x350] sm:$0xff]
    %v1588 = vld [vmem:[#allocation6 + $0x358] sm:$0xff]
    %v1589 = vld [vmem:[#allocation6 + $0x360] sm:$0xff]
    %v1590 = vld [vmem:[#allocation6 + $0x368] sm:$0xff]
    %v1591 = vld [vmem:[#allocation6 + $0x370] sm:$0xff]
    %v1592 = vld [vmem:[#allocation6 + $0x378] sm:$0xff]
    %v1593 = vld [vmem:[#allocation6 + $0x380] sm:$0xff]
    %v1594 = vld [vmem:[#allocation6 + $0x388] sm:$0xff]
    %v1595 = vld [vmem:[#allocation6 + $0x390] sm:$0xff]
    %v1596 = vld [vmem:[#allocation6 + $0x398] sm:$0xff]
    %v1597 = vld [vmem:[#allocation6 + $0x3a0] sm:$0xff]
    %v1598 = vld [vmem:[#allocation6 + $0x3a8] sm:$0xff]
    %v1599 = vld [vmem:[#allocation6 + $0x3b0] sm:$0xff]
    %v1600 = vld [vmem:[#allocation6 + $0x3b8] sm:$0xff]
    %v1601 = vld [vmem:[#allocation6 + $0x3c0] sm:$0xff]
    %v1602 = vld [vmem:[#allocation6 + $0x3c8] sm:$0xff]
    %v1603 = vld [vmem:[#allocation6 + $0x3d0] sm:$0xff]
    %v1604 = vld [vmem:[#allocation6 + $0x3d8] sm:$0xff]
    %v1605 = vld [vmem:[#allocation6 + $0x3e0] sm:$0xff]
    %v1606 = vld [vmem:[#allocation6 + $0x3e8] sm:$0xff]
    %v1607 = vld [vmem:[#allocation6 + $0x3f0] sm:$0xff]
    %v1608 = vld [vmem:[#allocation6 + $0x3f8] sm:$0xff]
    %v1609 = vld [vmem:[#allocation6 + $0x400] sm:$0xff]
    %v1610 = vld [vmem:[#allocation6 + $0x408] sm:$0xff]
    %v1611 = vld [vmem:[#allocation6 + $0x410] sm:$0xff]
    %v1612 = vld [vmem:[#allocation6 + $0x418] sm:$0xff]
    %v1613 = vld [vmem:[#allocation6 + $0x420] sm:$0xff]
    %v1614 = vld [vmem:[#allocation6 + $0x428] sm:$0xff]
    %v1615 = vld [vmem:[#allocation6 + $0x430] sm:$0xff]
    %v1616 = vld [vmem:[#allocation6 + $0x438] sm:$0xff]
    %v1617 = vld [vmem:[#allocation6 + $0x440] sm:$0xff]
    %v1618 = vld [vmem:[#allocation6 + $0x448] sm:$0xff]
    %v1619 = vld [vmem:[#allocation6 + $0x450] sm:$0xff]
    %v1620 = vld [vmem:[#allocation6 + $0x458] sm:$0xff]
    %v1621 = vld [vmem:[#allocation6 + $0x460] sm:$0xff]
    %v1622 = vld [vmem:[#allocation6 + $0x468] sm:$0xff]
    %v1623 = vld [vmem:[#allocation6 + $0x470] sm:$0xff]
    %v1624 = vld [vmem:[#allocation6 + $0x478] sm:$0xff]
    %v1625 = vld [vmem:[#allocation6 + $0x480] sm:$0xff]
    %v1626 = vld [vmem:[#allocation6 + $0x488] sm:$0xff]
    %v1627 = vld [vmem:[#allocation6 + $0x490] sm:$0xff]
    %v1628 = vld [vmem:[#allocation6 + $0x498] sm:$0xff]
    %v1629 = vld [vmem:[#allocation6 + $0x4a0] sm:$0xff]
    %v1630 = vld [vmem:[#allocation6 + $0x4a8] sm:$0xff]
    %v1631 = vld [vmem:[#allocation6 + $0x4b0] sm:$0xff]
    %v1632 = vld [vmem:[#allocation6 + $0x4b8] sm:$0xff]
    %v1633 = vld [vmem:[#allocation6 + $0x4c0] sm:$0xff]
    %v1634 = vld [vmem:[#allocation6 + $0x4c8] sm:$0xff]
    %v1635 = vld [vmem:[#allocation6 + $0x4d0] sm:$0xff]
    %v1636 = vld [vmem:[#allocation6 + $0x4d8] sm:$0xff]
    %v1637 = vld [vmem:[#allocation6 + $0x4e0] sm:$0xff]
    %v1638 = vld [vmem:[#allocation6 + $0x4e8] sm:$0xff]
    %v1639 = vld [vmem:[#allocation6 + $0x4f0] sm:$0xff]
    %v1640 = vld [vmem:[#allocation6 + $0x4f8] sm:$0xff]
    %v1642 = vlaneseq
    %v1643 = vshrl.u32 %v1642, 7
    %v1644 = vsub.s32 0, %v1643
    %v1645 = vrot.slane %v79, %v1644
    %v1646 = vlaneseq
    %v1647 = vshrl.u32 %v1646, 7
    %v1648 = vsub.s32 1, %v1647
    %v1649 = vrot.slane %v79, %v1648
    %v1650 = vlaneseq
    %v1651 = vshrl.u32 %v1650, 7
    %v1652 = vsub.s32 2, %v1651
    %v1653 = vrot.slane %v79, %v1652
    %v1654 = vlaneseq
    %v1655 = vshrl.u32 %v1654, 7
    %v1656 = vsub.s32 3, %v1655
    %v1657 = vrot.slane %v79, %v1656
    %v1822 = vunpack.c.l.b16 %v1481
    %v1823 = vunpack.c.h.b16 %v1481
    %v1824 = vunpack.c.l.b16 %v1482
    %v1825 = vunpack.c.h.b16 %v1482
    %v1826 = vunpack.c.l.b16 %v1483
    %v1827 = vunpack.c.h.b16 %v1483
    %v1828 = vunpack.c.l.b16 %v1484
    %v1829 = vunpack.c.h.b16 %v1484
    %v1830 = vunpack.c.l.b16 %v1485
    %v1831 = vunpack.c.h.b16 %v1485
    %v1832 = vunpack.c.l.b16 %v1486
    %v1833 = vunpack.c.h.b16 %v1486
    %v1834 = vunpack.c.l.b16 %v1487
    %v1835 = vunpack.c.h.b16 %v1487
    %v1836 = vunpack.c.l.b16 %v1488
    %v1837 = vunpack.c.h.b16 %v1488
    %v1838 = vunpack.c.l.b16 %v1489
    %v1839 = vunpack.c.h.b16 %v1489
    %v1840 = vunpack.c.l.b16 %v1490
    %v1841 = vunpack.c.h.b16 %v1490
    %v1842 = vunpack.c.l.b16 %v1491
    %v1843 = vunpack.c.h.b16 %v1491
    %v1844 = vunpack.c.l.b16 %v1492
    %v1845 = vunpack.c.h.b16 %v1492
    %v1846 = vunpack.c.l.b16 %v1493
    %v1847 = vunpack.c.h.b16 %v1493
    %v1848 = vunpack.c.l.b16 %v1494
    %v1849 = vunpack.c.h.b16 %v1494
    %v1850 = vunpack.c.l.b16 %v1495
    %v1851 = vunpack.c.h.b16 %v1495
    %v1852 = vunpack.c.l.b16 %v1496
    %v1853 = vunpack.c.h.b16 %v1496
    %v1854 = vunpack.c.l.b16 %v1497
    %v1855 = vunpack.c.h.b16 %v1497
    %v1856 = vunpack.c.l.b16 %v1498
    %v1857 = vunpack.c.h.b16 %v1498
    %v1858 = vunpack.c.l.b16 %v1499
    %v1859 = vunpack.c.h.b16 %v1499
    %v1860 = vunpack.c.l.b16 %v1500
    %v1861 = vunpack.c.h.b16 %v1500
    %v1862 = vunpack.c.l.b16 %v1501
    %v1863 = vunpack.c.h.b16 %v1501
    %v1864 = vunpack.c.l.b16 %v1502
    %v1865 = vunpack.c.h.b16 %v1502
    %v1866 = vunpack.c.l.b16 %v1503
    %v1867 = vunpack.c.h.b16 %v1503
    %v1868 = vunpack.c.l.b16 %v1504
    %v1869 = vunpack.c.h.b16 %v1504
    %v1870 = vunpack.c.l.b16 %v1505
    %v1871 = vunpack.c.h.b16 %v1505
    %v1872 = vunpack.c.l.b16 %v1506
    %v1873 = vunpack.c.h.b16 %v1506
    %v1874 = vunpack.c.l.b16 %v1507
    %v1875 = vunpack.c.h.b16 %v1507
    %v1876 = vunpack.c.l.b16 %v1508
    %v1877 = vunpack.c.h.b16 %v1508
    %v1878 = vunpack.c.l.b16 %v1509
    %v1879 = vunpack.c.h.b16 %v1509
    %v1880 = vunpack.c.l.b16 %v1510
    %v1881 = vunpack.c.h.b16 %v1510
    %v1882 = vunpack.c.l.b16 %v1511
    %v1883 = vunpack.c.h.b16 %v1511
    %v1884 = vunpack.c.l.b16 %v1512
    %v1885 = vunpack.c.h.b16 %v1512
    %v1886 = vunpack.c.l.b16 %v1513
    %v1887 = vunpack.c.h.b16 %v1513
    %v1888 = vunpack.c.l.b16 %v1514
    %v1889 = vunpack.c.h.b16 %v1514
    %v1890 = vunpack.c.l.b16 %v1515
    %v1891 = vunpack.c.h.b16 %v1515
    %v1892 = vunpack.c.l.b16 %v1516
    %v1893 = vunpack.c.h.b16 %v1516
    %v1894 = vunpack.c.l.b16 %v1517
    %v1895 = vunpack.c.h.b16 %v1517
    %v1896 = vunpack.c.l.b16 %v1518
    %v1897 = vunpack.c.h.b16 %v1518
    %v1898 = vunpack.c.l.b16 %v1519
    %v1899 = vunpack.c.h.b16 %v1519
    %v1900 = vunpack.c.l.b16 %v1520
    %v1901 = vunpack.c.h.b16 %v1520
    %v1902 = vunpack.c.l.b16 %v1521
    %v1903 = vunpack.c.h.b16 %v1521
    %v1904 = vunpack.c.l.b16 %v1522
    %v1905 = vunpack.c.h.b16 %v1522
    %v1906 = vunpack.c.l.b16 %v1523
    %v1907 = vunpack.c.h.b16 %v1523
    %v1908 = vunpack.c.l.b16 %v1524
    %v1909 = vunpack.c.h.b16 %v1524
    %v1910 = vunpack.c.l.b16 %v1525
    %v1911 = vunpack.c.h.b16 %v1525
    %v1912 = vunpack.c.l.b16 %v1526
    %v1913 = vunpack.c.h.b16 %v1526
    %v1914 = vunpack.c.l.b16 %v1527
    %v1915 = vunpack.c.h.b16 %v1527
    %v1916 = vunpack.c.l.b16 %v1528
    %v1917 = vunpack.c.h.b16 %v1528
    %v1918 = vunpack.c.l.b16 %v1529
    %v1919 = vunpack.c.h.b16 %v1529
    %v1920 = vunpack.c.l.b16 %v1530
    %v1921 = vunpack.c.h.b16 %v1530
    %v1922 = vunpack.c.l.b16 %v1531
    %v1923 = vunpack.c.h.b16 %v1531
    %v1924 = vunpack.c.l.b16 %v1532
    %v1925 = vunpack.c.h.b16 %v1532
    %v1926 = vunpack.c.l.b16 %v1533
    %v1927 = vunpack.c.h.b16 %v1533
    %v1928 = vunpack.c.l.b16 %v1534
    %v1929 = vunpack.c.h.b16 %v1534
    %v1930 = vunpack.c.l.b16 %v1535
    %v1931 = vunpack.c.h.b16 %v1535
    %v1932 = vunpack.c.l.b16 %v1536
    %v1933 = vunpack.c.h.b16 %v1536
    %v1934 = vunpack.c.l.b16 %v1537
    %v1935 = vunpack.c.h.b16 %v1537
    %v1936 = vunpack.c.l.b16 %v1538
    %v1937 = vunpack.c.h.b16 %v1538
    %v1938 = vunpack.c.l.b16 %v1539
    %v1939 = vunpack.c.h.b16 %v1539
    %v1940 = vunpack.c.l.b16 %v1540
    %v1941 = vunpack.c.h.b16 %v1540
    %v1942 = vunpack.c.l.b16 %v1541
    %v1943 = vunpack.c.h.b16 %v1541
    %v1944 = vunpack.c.l.b16 %v1542
    %v1945 = vunpack.c.h.b16 %v1542
    %v1946 = vunpack.c.l.b16 %v1543
    %v1947 = vunpack.c.h.b16 %v1543
    %v1948 = vunpack.c.l.b16 %v1544
    %v1949 = vunpack.c.h.b16 %v1544
    %v1950 = vunpack.c.l.b16 %v1545
    %v1951 = vunpack.c.h.b16 %v1545
    %v1952 = vunpack.c.l.b16 %v1546
    %v1953 = vunpack.c.h.b16 %v1546
    %v1954 = vunpack.c.l.b16 %v1547
    %v1955 = vunpack.c.h.b16 %v1547
    %v1956 = vunpack.c.l.b16 %v1548
    %v1957 = vunpack.c.h.b16 %v1548
    %v1958 = vunpack.c.l.b16 %v1549
    %v1959 = vunpack.c.h.b16 %v1549
    %v1960 = vunpack.c.l.b16 %v1550
    %v1961 = vunpack.c.h.b16 %v1550
    %v1962 = vunpack.c.l.b16 %v1551
    %v1963 = vunpack.c.h.b16 %v1551
    %v1964 = vunpack.c.l.b16 %v1552
    %v1965 = vunpack.c.h.b16 %v1552
    %v1966 = vunpack.c.l.b16 %v1553
    %v1967 = vunpack.c.h.b16 %v1553
    %v1968 = vunpack.c.l.b16 %v1554
    %v1969 = vunpack.c.h.b16 %v1554
    %v1970 = vunpack.c.l.b16 %v1555
    %v1971 = vunpack.c.h.b16 %v1555
    %v1972 = vunpack.c.l.b16 %v1556
    %v1973 = vunpack.c.h.b16 %v1556
    %v1974 = vunpack.c.l.b16 %v1557
    %v1975 = vunpack.c.h.b16 %v1557
    %v1976 = vunpack.c.l.b16 %v1558
    %v1977 = vunpack.c.h.b16 %v1558
    %v1978 = vunpack.c.l.b16 %v1559
    %v1979 = vunpack.c.h.b16 %v1559
    %v1980 = vunpack.c.l.b16 %v1560
    %v1981 = vunpack.c.h.b16 %v1560
    %v1982 = vunpack.c.l.b16 %v1561
    %v1983 = vunpack.c.h.b16 %v1561
    %v1984 = vunpack.c.l.b16 %v1562
    %v1985 = vunpack.c.h.b16 %v1562
    %v1986 = vunpack.c.l.b16 %v1563
    %v1987 = vunpack.c.h.b16 %v1563
    %v1988 = vunpack.c.l.b16 %v1564
    %v1989 = vunpack.c.h.b16 %v1564
    %v1990 = vunpack.c.l.b16 %v1565
    %v1991 = vunpack.c.h.b16 %v1565
    %v1992 = vunpack.c.l.b16 %v1566
    %v1993 = vunpack.c.h.b16 %v1566
    %v1994 = vunpack.c.l.b16 %v1567
    %v1995 = vunpack.c.h.b16 %v1567
    %v1996 = vunpack.c.l.b16 %v1568
    %v1997 = vunpack.c.h.b16 %v1568
    %v1998 = vunpack.c.l.b16 %v1569
    %v1999 = vunpack.c.h.b16 %v1569
    %v2000 = vunpack.c.l.b16 %v1570
    %v2001 = vunpack.c.h.b16 %v1570
    %v2002 = vunpack.c.l.b16 %v1571
    %v2003 = vunpack.c.h.b16 %v1571
    %v2004 = vunpack.c.l.b16 %v1572
    %v2005 = vunpack.c.h.b16 %v1572
    %v2006 = vunpack.c.l.b16 %v1573
    %v2007 = vunpack.c.h.b16 %v1573
    %v2008 = vunpack.c.l.b16 %v1574
    %v2009 = vunpack.c.h.b16 %v1574
    %v2010 = vunpack.c.l.b16 %v1575
    %v2011 = vunpack.c.h.b16 %v1575
    %v2012 = vunpack.c.l.b16 %v1576
    %v2013 = vunpack.c.h.b16 %v1576
    %v2014 = vunpack.c.l.b16 %v1577
    %v2015 = vunpack.c.h.b16 %v1577
    %v2016 = vunpack.c.l.b16 %v1578
    %v2017 = vunpack.c.h.b16 %v1578
    %v2018 = vunpack.c.l.b16 %v1579
    %v2019 = vunpack.c.h.b16 %v1579
    %v2020 = vunpack.c.l.b16 %v1580
    %v2021 = vunpack.c.h.b16 %v1580
    %v2022 = vunpack.c.l.b16 %v1581
    %v2023 = vunpack.c.h.b16 %v1581
    %v2024 = vunpack.c.l.b16 %v1582
    %v2025 = vunpack.c.h.b16 %v1582
    %v2026 = vunpack.c.l.b16 %v1583
    %v2027 = vunpack.c.h.b16 %v1583
    %v2028 = vunpack.c.l.b16 %v1584
    %v2029 = vunpack.c.h.b16 %v1584
    %v2030 = vunpack.c.l.b16 %v1585
    %v2031 = vunpack.c.h.b16 %v1585
    %v2032 = vunpack.c.l.b16 %v1586
    %v2033 = vunpack.c.h.b16 %v1586
    %v2034 = vunpack.c.l.b16 %v1587
    %v2035 = vunpack.c.h.b16 %v1587
    %v2036 = vunpack.c.l.b16 %v1588
    %v2037 = vunpack.c.h.b16 %v1588
    %v2038 = vunpack.c.l.b16 %v1589
    %v2039 = vunpack.c.h.b16 %v1589
    %v2040 = vunpack.c.l.b16 %v1590
    %v2041 = vunpack.c.h.b16 %v1590
    %v2042 = vunpack.c.l.b16 %v1591
    %v2043 = vunpack.c.h.b16 %v1591
    %v2044 = vunpack.c.l.b16 %v1592
    %v2045 = vunpack.c.h.b16 %v1592
    %v2046 = vunpack.c.l.b16 %v1593
    %v2047 = vunpack.c.h.b16 %v1593
    %v2048 = vunpack.c.l.b16 %v1594
    %v2049 = vunpack.c.h.b16 %v1594
    %v2050 = vunpack.c.l.b16 %v1595
    %v2051 = vunpack.c.h.b16 %v1595
    %v2052 = vunpack.c.l.b16 %v1596
    %v2053 = vunpack.c.h.b16 %v1596
    %v2054 = vunpack.c.l.b16 %v1597
    %v2055 = vunpack.c.h.b16 %v1597
    %v2056 = vunpack.c.l.b16 %v1598
    %v2057 = vunpack.c.h.b16 %v1598
    %v2058 = vunpack.c.l.b16 %v1599
    %v2059 = vunpack.c.h.b16 %v1599
    %v2060 = vunpack.c.l.b16 %v1600
    %v2061 = vunpack.c.h.b16 %v1600
    %v2062 = vunpack.c.l.b16 %v1601
    %v2063 = vunpack.c.h.b16 %v1601
    %v2064 = vunpack.c.l.b16 %v1602
    %v2065 = vunpack.c.h.b16 %v1602
    %v2066 = vunpack.c.l.b16 %v1603
    %v2067 = vunpack.c.h.b16 %v1603
    %v2068 = vunpack.c.l.b16 %v1604
    %v2069 = vunpack.c.h.b16 %v1604
    %v2070 = vunpack.c.l.b16 %v1605
    %v2071 = vunpack.c.h.b16 %v1605
    %v2072 = vunpack.c.l.b16 %v1606
    %v2073 = vunpack.c.h.b16 %v1606
    %v2074 = vunpack.c.l.b16 %v1607
    %v2075 = vunpack.c.h.b16 %v1607
    %v2076 = vunpack.c.l.b16 %v1608
    %v2077 = vunpack.c.h.b16 %v1608
    %v2078 = vunpack.c.l.b16 %v1609
    %v2079 = vunpack.c.h.b16 %v1609
    %v2080 = vunpack.c.l.b16 %v1610
    %v2081 = vunpack.c.h.b16 %v1610
    %v2082 = vunpack.c.l.b16 %v1611
    %v2083 = vunpack.c.h.b16 %v1611
    %v2084 = vunpack.c.l.b16 %v1612
    %v2085 = vunpack.c.h.b16 %v1612
    %v2086 = vunpack.c.l.b16 %v1613
    %v2087 = vunpack.c.h.b16 %v1613
    %v2088 = vunpack.c.l.b16 %v1614
    %v2089 = vunpack.c.h.b16 %v1614
    %v2090 = vunpack.c.l.b16 %v1615
    %v2091 = vunpack.c.h.b16 %v1615
    %v2092 = vunpack.c.l.b16 %v1616
    %v2093 = vunpack.c.h.b16 %v1616
    %v2094 = vunpack.c.l.b16 %v1617
    %v2095 = vunpack.c.h.b16 %v1617
    %v2096 = vunpack.c.l.b16 %v1618
    %v2097 = vunpack.c.h.b16 %v1618
    %v2098 = vunpack.c.l.b16 %v1619
    %v2099 = vunpack.c.h.b16 %v1619
    %v2100 = vunpack.c.l.b16 %v1620
    %v2101 = vunpack.c.h.b16 %v1620
    %v2102 = vunpack.c.l.b16 %v1621
    %v2103 = vunpack.c.h.b16 %v1621
    %v2104 = vunpack.c.l.b16 %v1622
    %v2105 = vunpack.c.h.b16 %v1622
    %v2106 = vunpack.c.l.b16 %v1623
    %v2107 = vunpack.c.h.b16 %v1623
    %v2108 = vunpack.c.l.b16 %v1624
    %v2109 = vunpack.c.h.b16 %v1624
    %v2110 = vunpack.c.l.b16 %v1625
    %v2111 = vunpack.c.h.b16 %v1625
    %v2112 = vunpack.c.l.b16 %v1626
    %v2113 = vunpack.c.h.b16 %v1626
    %v2114 = vunpack.c.l.b16 %v1627
    %v2115 = vunpack.c.h.b16 %v1627
    %v2116 = vunpack.c.l.b16 %v1628
    %v2117 = vunpack.c.h.b16 %v1628
    %v2118 = vunpack.c.l.b16 %v1629
    %v2119 = vunpack.c.h.b16 %v1629
    %v2120 = vunpack.c.l.b16 %v1630
    %v2121 = vunpack.c.h.b16 %v1630
    %v2122 = vunpack.c.l.b16 %v1631
    %v2123 = vunpack.c.h.b16 %v1631
    %v2124 = vunpack.c.l.b16 %v1632
    %v2125 = vunpack.c.h.b16 %v1632
    %v2126 = vunpack.c.l.b16 %v1633
    %v2127 = vunpack.c.h.b16 %v1633
    %v2128 = vunpack.c.l.b16 %v1634
    %v2129 = vunpack.c.h.b16 %v1634
    %v2130 = vunpack.c.l.b16 %v1635
    %v2131 = vunpack.c.h.b16 %v1635
    %v2132 = vunpack.c.l.b16 %v1636
    %v2133 = vunpack.c.h.b16 %v1636
    %v2134 = vunpack.c.l.b16 %v1637
    %v2135 = vunpack.c.h.b16 %v1637
    %v2136 = vunpack.c.l.b16 %v1638
    %v2137 = vunpack.c.h.b16 %v1638
    %v2138 = vunpack.c.l.b16 %v1639
    %v2139 = vunpack.c.h.b16 %v1639
    %v2140 = vunpack.c.l.b16 %v1640
    %v2141 = vunpack.c.h.b16 %v1640
    %v2142 = vpack.c.b16 %v1826, %v1822
    %v2143 = vpack.c.b16 %v1827, %v1823
    %v2144 = vpack.c.b16 %v1828, %v1824
    %v2145 = vpack.c.b16 %v1829, %v1825
    %v2146 = vpack.c.b16 %v1834, %v1830
    %v2147 = vpack.c.b16 %v1835, %v1831
    %v2148 = vpack.c.b16 %v1836, %v1832
    %v2149 = vpack.c.b16 %v1837, %v1833
    %v2150 = vpack.c.b16 %v1842, %v1838
    %v2151 = vpack.c.b16 %v1843, %v1839
    %v2152 = vpack.c.b16 %v1844, %v1840
    %v2153 = vpack.c.b16 %v1845, %v1841
    %v2154 = vpack.c.b16 %v1850, %v1846
    %v2155 = vpack.c.b16 %v1851, %v1847
    %v2156 = vpack.c.b16 %v1852, %v1848
    %v2157 = vpack.c.b16 %v1853, %v1849
    %v2158 = vpack.c.b16 %v1858, %v1854
    %v2159 = vpack.c.b16 %v1859, %v1855
    %v2160 = vpack.c.b16 %v1860, %v1856
    %v2161 = vpack.c.b16 %v1861, %v1857
    %v2162 = vpack.c.b16 %v1866, %v1862
    %v2163 = vpack.c.b16 %v1867, %v1863
    %v2164 = vpack.c.b16 %v1868, %v1864
    %v2165 = vpack.c.b16 %v1869, %v1865
    %v2166 = vpack.c.b16 %v1874, %v1870
    %v2167 = vpack.c.b16 %v1875, %v1871
    %v2168 = vpack.c.b16 %v1876, %v1872
    %v2169 = vpack.c.b16 %v1877, %v1873
    %v2170 = vpack.c.b16 %v1882, %v1878
    %v2171 = vpack.c.b16 %v1883, %v1879
    %v2172 = vpack.c.b16 %v1884, %v1880
    %v2173 = vpack.c.b16 %v1885, %v1881
    %v2174 = vpack.c.b16 %v1890, %v1886
    %v2175 = vpack.c.b16 %v1891, %v1887
    %v2176 = vpack.c.b16 %v1892, %v1888
    %v2177 = vpack.c.b16 %v1893, %v1889
    %v2178 = vpack.c.b16 %v1898, %v1894
    %v2179 = vpack.c.b16 %v1899, %v1895
    %v2180 = vpack.c.b16 %v1900, %v1896
    %v2181 = vpack.c.b16 %v1901, %v1897
    %v2182 = vpack.c.b16 %v1906, %v1902
    %v2183 = vpack.c.b16 %v1907, %v1903
    %v2184 = vpack.c.b16 %v1908, %v1904
    %v2185 = vpack.c.b16 %v1909, %v1905
    %v2186 = vpack.c.b16 %v1914, %v1910
    %v2187 = vpack.c.b16 %v1915, %v1911
    %v2188 = vpack.c.b16 %v1916, %v1912
    %v2189 = vpack.c.b16 %v1917, %v1913
    %v2190 = vpack.c.b16 %v1922, %v1918
    %v2191 = vpack.c.b16 %v1923, %v1919
    %v2192 = vpack.c.b16 %v1924, %v1920
    %v2193 = vpack.c.b16 %v1925, %v1921
    %v2194 = vpack.c.b16 %v1930, %v1926
    %v2195 = vpack.c.b16 %v1931, %v1927
    %v2196 = vpack.c.b16 %v1932, %v1928
    %v2197 = vpack.c.b16 %v1933, %v1929
    %v2198 = vpack.c.b16 %v1938, %v1934
    %v2199 = vpack.c.b16 %v1939, %v1935
    %v2200 = vpack.c.b16 %v1940, %v1936
    %v2201 = vpack.c.b16 %v1941, %v1937
    %v2202 = vpack.c.b16 %v1946, %v1942
    %v2203 = vpack.c.b16 %v1947, %v1943
    %v2204 = vpack.c.b16 %v1948, %v1944
    %v2205 = vpack.c.b16 %v1949, %v1945
    %v2206 = vpack.c.b16 %v1954, %v1950
    %v2207 = vpack.c.b16 %v1955, %v1951
    %v2208 = vpack.c.b16 %v1956, %v1952
    %v2209 = vpack.c.b16 %v1957, %v1953
    %v2210 = vpack.c.b16 %v1962, %v1958
    %v2211 = vpack.c.b16 %v1963, %v1959
    %v2212 = vpack.c.b16 %v1964, %v1960
    %v2213 = vpack.c.b16 %v1965, %v1961
    %v2214 = vpack.c.b16 %v1970, %v1966
    %v2215 = vpack.c.b16 %v1971, %v1967
    %v2216 = vpack.c.b16 %v1972, %v1968
    %v2217 = vpack.c.b16 %v1973, %v1969
    %v2218 = vpack.c.b16 %v1978, %v1974
    %v2219 = vpack.c.b16 %v1979, %v1975
    %v2220 = vpack.c.b16 %v1980, %v1976
    %v2221 = vpack.c.b16 %v1981, %v1977
    %v2222 = vpack.c.b16 %v1986, %v1982
    %v2223 = vpack.c.b16 %v1987, %v1983
    %v2224 = vpack.c.b16 %v1988, %v1984
    %v2225 = vpack.c.b16 %v1989, %v1985
    %v2226 = vpack.c.b16 %v1994, %v1990
    %v2227 = vpack.c.b16 %v1995, %v1991
    %v2228 = vpack.c.b16 %v1996, %v1992
    %v2229 = vpack.c.b16 %v1997, %v1993
    %v2230 = vpack.c.b16 %v2002, %v1998
    %v2231 = vpack.c.b16 %v2003, %v1999
    %v2232 = vpack.c.b16 %v2004, %v2000
    %v2233 = vpack.c.b16 %v2005, %v2001
    %v2234 = vpack.c.b16 %v2010, %v2006
    %v2235 = vpack.c.b16 %v2011, %v2007
    %v2236 = vpack.c.b16 %v2012, %v2008
    %v2237 = vpack.c.b16 %v2013, %v2009
    %v2238 = vpack.c.b16 %v2018, %v2014
    %v2239 = vpack.c.b16 %v2019, %v2015
    %v2240 = vpack.c.b16 %v2020, %v2016
    %v2241 = vpack.c.b16 %v2021, %v2017
    %v2242 = vpack.c.b16 %v2026, %v2022
    %v2243 = vpack.c.b16 %v2027, %v2023
    %v2244 = vpack.c.b16 %v2028, %v2024
    %v2245 = vpack.c.b16 %v2029, %v2025
    %v2246 = vpack.c.b16 %v2034, %v2030
    %v2247 = vpack.c.b16 %v2035, %v2031
    %v2248 = vpack.c.b16 %v2036, %v2032
    %v2249 = vpack.c.b16 %v2037, %v2033
    %v2250 = vpack.c.b16 %v2042, %v2038
    %v2251 = vpack.c.b16 %v2043, %v2039
    %v2252 = vpack.c.b16 %v2044, %v2040
    %v2253 = vpack.c.b16 %v2045, %v2041
    %v2254 = vpack.c.b16 %v2050, %v2046
    %v2255 = vpack.c.b16 %v2051, %v2047
    %v2256 = vpack.c.b16 %v2052, %v2048
    %v2257 = vpack.c.b16 %v2053, %v2049
    %v2258 = vpack.c.b16 %v2058, %v2054
    %v2259 = vpack.c.b16 %v2059, %v2055
    %v2260 = vpack.c.b16 %v2060, %v2056
    %v2261 = vpack.c.b16 %v2061, %v2057
    %v2262 = vpack.c.b16 %v2066, %v2062
    %v2263 = vpack.c.b16 %v2067, %v2063
    %v2264 = vpack.c.b16 %v2068, %v2064
    %v2265 = vpack.c.b16 %v2069, %v2065
    %v2266 = vpack.c.b16 %v2074, %v2070
    %v2267 = vpack.c.b16 %v2075, %v2071
    %v2268 = vpack.c.b16 %v2076, %v2072
    %v2269 = vpack.c.b16 %v2077, %v2073
    %v2270 = vpack.c.b16 %v2082, %v2078
    %v2271 = vpack.c.b16 %v2083, %v2079
    %v2272 = vpack.c.b16 %v2084, %v2080
    %v2273 = vpack.c.b16 %v2085, %v2081
    %v2274 = vpack.c.b16 %v2090, %v2086
    %v2275 = vpack.c.b16 %v2091, %v2087
    %v2276 = vpack.c.b16 %v2092, %v2088
    %v2277 = vpack.c.b16 %v2093, %v2089
    %v2278 = vpack.c.b16 %v2098, %v2094
    %v2279 = vpack.c.b16 %v2099, %v2095
    %v2280 = vpack.c.b16 %v2100, %v2096
    %v2281 = vpack.c.b16 %v2101, %v2097
    %v2282 = vpack.c.b16 %v2106, %v2102
    %v2283 = vpack.c.b16 %v2107, %v2103
    %v2284 = vpack.c.b16 %v2108, %v2104
    %v2285 = vpack.c.b16 %v2109, %v2105
    %v2286 = vpack.c.b16 %v2114, %v2110
    %v2287 = vpack.c.b16 %v2115, %v2111
    %v2288 = vpack.c.b16 %v2116, %v2112
    %v2289 = vpack.c.b16 %v2117, %v2113
    %v2290 = vpack.c.b16 %v2122, %v2118
    %v2291 = vpack.c.b16 %v2123, %v2119
    %v2292 = vpack.c.b16 %v2124, %v2120
    %v2293 = vpack.c.b16 %v2125, %v2121
    %v2294 = vpack.c.b16 %v2130, %v2126
    %v2295 = vpack.c.b16 %v2131, %v2127
    %v2296 = vpack.c.b16 %v2132, %v2128
    %v2297 = vpack.c.b16 %v2133, %v2129
    %v2298 = vpack.c.b16 %v2138, %v2134
    %v2299 = vpack.c.b16 %v2139, %v2135
    %v2300 = vpack.c.b16 %v2140, %v2136
    %v2301 = vpack.c.b16 %v2141, %v2137
    %2462 = vmatprep.subr.bf16.mxu0 %v2171
    %2463 = vmatpush1.bf16.msra.mxu0 %v2170
    %2464 = vmatprep.subr.bf16.mxu0 %v2167
    %2465 = vmatpush1.bf16.msra.mxu0 %v2166
    %2466 = vmatprep.subr.bf16.mxu0 %v2163
    %2467 = vmatpush1.bf16.msra.mxu0 %v2162
    %2468 = vmatprep.subr.bf16.mxu0 %v2159
    %2469 = vmatpush1.bf16.msra.mxu0 %v2158
    %2470 = vmatprep.subr.bf16.mxu0 %v2155
    %2471 = vmatpush1.bf16.msra.mxu0 %v2154
    %2472 = vmatprep.subr.bf16.mxu0 %v2151
    %2473 = vmatpush1.bf16.msra.mxu0 %v2150
    %2474 = vmatprep.subr.bf16.mxu0 %v2147
    %2475 = vmatpush1.bf16.msra.mxu0 %v2146
    %2476 = vmatprep.subr.bf16.mxu0 %v2143
    %2477 = vmatpush1.bf16.msra.mxu0 %v2142
    %2478 = vmatprep.subr.bf16.mxu0 %v2203
    %2479 = vmatpush2.bf16.msra.mxu0 %v2202
    %2480 = vmatprep.subr.bf16.mxu0 %v2199
    %2481 = vmatpush2.bf16.msra.mxu0 %v2198
    %2482 = vmatprep.subr.bf16.mxu0 %v2195
    %2483 = vmatpush2.bf16.msra.mxu0 %v2194
    %2484 = vmatprep.subr.bf16.mxu0 %v2191
    %2485 = vmatpush2.bf16.msra.mxu0 %v2190
    %2486 = vmatprep.subr.bf16.mxu0 %v2187
    %2487 = vmatpush2.bf16.msra.mxu0 %v2186
    %2488 = vmatprep.subr.bf16.mxu0 %v2183
    %2489 = vmatpush2.bf16.msra.mxu0 %v2182
    %2490 = vmatprep.subr.bf16.mxu0 %v2179
    %2491 = vmatpush2.bf16.msra.mxu0 %v2178
    %2492 = vmatprep.subr.bf16.mxu0 %v2175
    %2493 = vmatpush2.bf16.msra.mxu0 %v2174
    %2494 = vmatprep.mubr.bf16.mxu0 %v1477
    %2495 = vmatmul.mubr.bf16.gmra.mxu0 %v1476
    %v2496 = vpop.f32.mrf.mxu0
    %v2497 = vadd.f32 %v1645, %v2496
    %v2498 = vpop.f32.mrf.mxu0
    %v2499 = vadd.f32 %v1649, %v2498
    %v2500 = vpop.f32.mrf.mxu0
    %v2501 = vpop.f32.mrf.mxu0
    %2502 = vdwg.mxu0
    %2503 = vmatprep.subr.bf16.mxu0 %v2235
    %2504 = vmatpush1.bf16.msra.mxu0 %v2234
    %2505 = vmatprep.subr.bf16.mxu0 %v2231
    %2506 = vmatpush1.bf16.msra.mxu0 %v2230
    %2507 = vmatprep.subr.bf16.mxu0 %v2227
    %2508 = vmatpush1.bf16.msra.mxu0 %v2226
    %2509 = vmatprep.subr.bf16.mxu0 %v2223
    %2510 = vmatpush1.bf16.msra.mxu0 %v2222
    %2511 = vmatprep.subr.bf16.mxu0 %v2219
    %2512 = vmatpush1.bf16.msra.mxu0 %v2218
    %2513 = vmatprep.subr.bf16.mxu0 %v2215
    %2514 = vmatpush1.bf16.msra.mxu0 %v2214
    %2515 = vmatprep.subr.bf16.mxu0 %v2211
    %2516 = vmatpush1.bf16.msra.mxu0 %v2210
    %2517 = vmatprep.subr.bf16.mxu0 %v2207
    %2518 = vmatpush1.bf16.msra.mxu0 %v2206
    %2519 = vmatprep.subr.bf16.mxu0 %v2267
    %2520 = vmatpush2.bf16.msra.mxu0 %v2266
    %2521 = vmatprep.subr.bf16.mxu0 %v2263
    %2522 = vmatpush2.bf16.msra.mxu0 %v2262
    %2523 = vmatprep.subr.bf16.mxu0 %v2259
    %2524 = vmatpush2.bf16.msra.mxu0 %v2258
    %2525 = vmatprep.subr.bf16.mxu0 %v2255
    %2526 = vmatpush2.bf16.msra.mxu0 %v2254
    %2527 = vmatprep.subr.bf16.mxu0 %v2251
    %2528 = vmatpush2.bf16.msra.mxu0 %v2250
    %2529 = vmatprep.subr.bf16.mxu0 %v2247
    %2530 = vmatpush2.bf16.msra.mxu0 %v2246
    %2531 = vmatprep.subr.bf16.mxu0 %v2243
    %2532 = vmatpush2.bf16.msra.mxu0 %v2242
    %2533 = vmatprep.subr.bf16.mxu0 %v2239
    %2534 = vmatpush2.bf16.msra.mxu0 %v2238
    %2535 = vmatprep.mubr.bf16.mxu0 %v1479
    %2536 = vmatmul.mubr.bf16.gmra.mxu0 %v1478
    %v2537 = vpop.f32.mrf.mxu0
    %v2538 = vadd.f32 %v2497, %v2537
    %v2539 = vpop.f32.mrf.mxu0
    %v2540 = vadd.f32 %v2499, %v2539
    %v2541 = vpop.f32.mrf.mxu0
    %v2542 = vpop.f32.mrf.mxu0
    %2543 = vdwg.mxu0
    %2544 = vmatprep.subr.bf16.mxu0 %v2299
    %2545 = vmatpush1.bf16.msra.mxu0 %v2298
    %2546 = vmatprep.subr.bf16.mxu0 %v2295
    %2547 = vmatpush1.bf16.msra.mxu0 %v2294
    %2548 = vmatprep.subr.bf16.mxu0 %v2291
    %2549 = vmatpush1.bf16.msra.mxu0 %v2290
    %2550 = vmatprep.subr.bf16.mxu0 %v2287
    %2551 = vmatpush1.bf16.msra.mxu0 %v2286
    %2552 = vmatprep.subr.bf16.mxu0 %v2283
    %2553 = vmatpush1.bf16.msra.mxu0 %v2282
    %2554 = vmatprep.subr.bf16.mxu0 %v2279
    %2555 = vmatpush1.bf16.msra.mxu0 %v2278
    %2556 = vmatprep.subr.bf16.mxu0 %v2275
    %2557 = vmatpush1.bf16.msra.mxu0 %v2274
    %2558 = vmatprep.subr.bf16.mxu0 %v2271
    %2559 = vmatpush1.bf16.msra.mxu0 %v2270
    %2560 = vmatprep.subr.bf16.mxu0 0
    %2561 = vmatpush2.bf16.msra.mxu0 0
    %2562 = vmatprep.subr.bf16.mxu0 0
    %2563 = vmatpush2.bf16.msra.mxu0 0
    %2564 = vmatprep.subr.bf16.mxu0 0
    %2565 = vmatpush2.bf16.msra.mxu0 0
    %2566 = vmatprep.subr.bf16.mxu0 0
    %2567 = vmatpush2.bf16.msra.mxu0 0
    %2568 = vmatprep.subr.bf16.mxu0 0
    %2569 = vmatpush2.bf16.msra.mxu0 0
    %2570 = vmatprep.subr.bf16.mxu0 0
    %2571 = vmatpush2.bf16.msra.mxu0 0
    %2572 = vmatprep.subr.bf16.mxu0 0
    %2573 = vmatpush2.bf16.msra.mxu0 0
    %2574 = vmatprep.subr.bf16.mxu0 0
    %2575 = vmatpush2.bf16.msra.mxu0 0
    %2576 = vmatprep.mubr.bf16.mxu0 0
    %2577 = vmatmul.mubr.bf16.gmra.mxu0 %v1480
    %v2578 = vpop.f32.mrf.mxu0
    %v2579 = vadd.f32 %v2538, %v2578
    %v2580 = vpop.f32.mrf.mxu0
    %v2581 = vadd.f32 %v2540, %v2580
    %v2582 = vpop.f32.mrf.mxu0
    %v2583 = vpop.f32.mrf.mxu0
    %2584 = vdwg.mxu0
    %2585 = vmatprep.subr.bf16.mxu0 %v2173
    %2586 = vmatpush1.bf16.msra.mxu0 %v2172
    %2587 = vmatprep.subr.bf16.mxu0 %v2169
    %2588 = vmatpush1.bf16.msra.mxu0 %v2168
    %2589 = vmatprep.subr.bf16.mxu0 %v2165
    %2590 = vmatpush1.bf16.msra.mxu0 %v2164
    %2591 = vmatprep.subr.bf16.mxu0 %v2161
    %2592 = vmatpush1.bf16.msra.mxu0 %v2160
    %2593 = vmatprep.subr.bf16.mxu0 %v2157
    %2594 = vmatpush1.bf16.msra.mxu0 %v2156
    %2595 = vmatprep.subr.bf16.mxu0 %v2153
    %2596 = vmatpush1.bf16.msra.mxu0 %v2152
    %2597 = vmatprep.subr.bf16.mxu0 %v2149
    %2598 = vmatpush1.bf16.msra.mxu0 %v2148
    %2599 = vmatprep.subr.bf16.mxu0 %v2145
    %2600 = vmatpush1.bf16.msra.mxu0 %v2144
    %2601 = vmatprep.subr.bf16.mxu0 %v2205
    %2602 = vmatpush2.bf16.msra.mxu0 %v2204
    %2603 = vmatprep.subr.bf16.mxu0 %v2201
    %2604 = vmatpush2.bf16.msra.mxu0 %v2200
    %2605 = vmatprep.subr.bf16.mxu0 %v2197
    %2606 = vmatpush2.bf16.msra.mxu0 %v2196
    %2607 = vmatprep.subr.bf16.mxu0 %v2193
    %2608 = vmatpush2.bf16.msra.mxu0 %v2192
    %2609 = vmatprep.subr.bf16.mxu0 %v2189
    %2610 = vmatpush2.bf16.msra.mxu0 %v2188
    %2611 = vmatprep.subr.bf16.mxu0 %v2185
    %2612 = vmatpush2.bf16.msra.mxu0 %v2184
    %2613 = vmatprep.subr.bf16.mxu0 %v2181
    %2614 = vmatpush2.bf16.msra.mxu0 %v2180
    %2615 = vmatprep.subr.bf16.mxu0 %v2177
    %2616 = vmatpush2.bf16.msra.mxu0 %v2176
    %2617 = vmatprep.mubr.bf16.mxu0 %v1477
    %2618 = vmatmul.mubr.bf16.gmra.mxu0 %v1476
    %v2619 = vpop.f32.mrf.mxu0
    %v2620 = vadd.f32 %v1653, %v2619
    %v2621 = vpop.f32.mrf.mxu0
    %v2622 = vadd.f32 %v1657, %v2621
    %v2623 = vpop.f32.mrf.mxu0
    %v2624 = vpop.f32.mrf.mxu0
    %2625 = vdwg.mxu0
    %2626 = vmatprep.subr.bf16.mxu0 %v2237
    %2627 = vmatpush1.bf16.msra.mxu0 %v2236
    %2628 = vmatprep.subr.bf16.mxu0 %v2233
    %2629 = vmatpush1.bf16.msra.mxu0 %v2232
    %2630 = vmatprep.subr.bf16.mxu0 %v2229
    %2631 = vmatpush1.bf16.msra.mxu0 %v2228
    %2632 = vmatprep.subr.bf16.mxu0 %v2225
    %2633 = vmatpush1.bf16.msra.mxu0 %v2224
    %2634 = vmatprep.subr.bf16.mxu0 %v2221
    %2635 = vmatpush1.bf16.msra.mxu0 %v2220
    %2636 = vmatprep.subr.bf16.mxu0 %v2217
    %2637 = vmatpush1.bf16.msra.mxu0 %v2216
    %2638 = vmatprep.subr.bf16.mxu0 %v2213
    %2639 = vmatpush1.bf16.msra.mxu0 %v2212
    %2640 = vmatprep.subr.bf16.mxu0 %v2209
    %2641 = vmatpush1.bf16.msra.mxu0 %v2208
    %2642 = vmatprep.subr.bf16.mxu0 %v2269
    %2643 = vmatpush2.bf16.msra.mxu0 %v2268
    %2644 = vmatprep.subr.bf16.mxu0 %v2265
    %2645 = vmatpush2.bf16.msra.mxu0 %v2264
    %2646 = vmatprep.subr.bf16.mxu0 %v2261
    %2647 = vmatpush2.bf16.msra.mxu0 %v2260
    %2648 = vmatprep.subr.bf16.mxu0 %v2257
    %2649 = vmatpush2.bf16.msra.mxu0 %v2256
    %2650 = vmatprep.subr.bf16.mxu0 %v2253
    %2651 = vmatpush2.bf16.msra.mxu0 %v2252
    %2652 = vmatprep.subr.bf16.mxu0 %v2249
    %2653 = vmatpush2.bf16.msra.mxu0 %v2248
    %2654 = vmatprep.subr.bf16.mxu0 %v2245
    %2655 = vmatpush2.bf16.msra.mxu0 %v2244
    %2656 = vmatprep.subr.bf16.mxu0 %v2241
    %2657 = vmatpush2.bf16.msra.mxu0 %v2240
    %2658 = vmatprep.mubr.bf16.mxu0 %v1479
    %2659 = vmatmul.mubr.bf16.gmra.mxu0 %v1478
    %v2660 = vpop.f32.mrf.mxu0
    %v2661 = vadd.f32 %v2620, %v2660
    %v2662 = vpop.f32.mrf.mxu0
    %v2663 = vadd.f32 %v2622, %v2662
    %v2664 = vpop.f32.mrf.mxu0
    %v2665 = vpop.f32.mrf.mxu0
    %2666 = vdwg.mxu0
    %2667 = vmatprep.subr.bf16.mxu0 %v2301
    %2668 = vmatpush1.bf16.msra.mxu0 %v2300
    %2669 = vmatprep.subr.bf16.mxu0 %v2297
    %2670 = vmatpush1.bf16.msra.mxu0 %v2296
    %2671 = vmatprep.subr.bf16.mxu0 %v2293
    %2672 = vmatpush1.bf16.msra.mxu0 %v2292
    %2673 = vmatprep.subr.bf16.mxu0 %v2289
    %2674 = vmatpush1.bf16.msra.mxu0 %v2288
    %2675 = vmatprep.subr.bf16.mxu0 %v2285
    %2676 = vmatpush1.bf16.msra.mxu0 %v2284
    %2677 = vmatprep.subr.bf16.mxu0 %v2281
    %2678 = vmatpush1.bf16.msra.mxu0 %v2280
    %2679 = vmatprep.subr.bf16.mxu0 %v2277
    %2680 = vmatpush1.bf16.msra.mxu0 %v2276
    %2681 = vmatprep.subr.bf16.mxu0 %v2273
    %2682 = vmatpush1.bf16.msra.mxu0 %v2272
    %2683 = vmatprep.subr.bf16.mxu0 0
    %2684 = vmatpush2.bf16.msra.mxu0 0
    %2685 = vmatprep.subr.bf16.mxu0 0
    %2686 = vmatpush2.bf16.msra.mxu0 0
    %2687 = vmatprep.subr.bf16.mxu0 0
    %2688 = vmatpush2.bf16.msra.mxu0 0
    %2689 = vmatprep.subr.bf16.mxu0 0
    %2690 = vmatpush2.bf16.msra.mxu0 0
    %2691 = vmatprep.subr.bf16.mxu0 0
    %2692 = vmatpush2.bf16.msra.mxu0 0
    %2693 = vmatprep.subr.bf16.mxu0 0
    %2694 = vmatpush2.bf16.msra.mxu0 0
    %2695 = vmatprep.subr.bf16.mxu0 0
    %2696 = vmatpush2.bf16.msra.mxu0 0
    %2697 = vmatprep.subr.bf16.mxu0 0
    %2698 = vmatpush2.bf16.msra.mxu0 0
    %2699 = vmatprep.mubr.bf16.mxu0 0
    %2700 = vmatmul.mubr.bf16.gmra.mxu0 %v1480
    %v2701 = vpop.f32.mrf.mxu0
    %v2702 = vadd.f32 %v2661, %v2701
    %v2703 = vpop.f32.mrf.mxu0
    %v2704 = vadd.f32 %v2663, %v2703
    %v2705 = vpop.f32.mrf.mxu0
    %v2706 = vpop.f32.mrf.mxu0
    %2707 = vdwg.mxu0
    %v2708 = vtanh.pop %v2579
    %v2709 = vtanh.pop %v2581
    %v2710 = vtanh.pop %v2702
    %v2711 = vtanh.pop %v2704
    %v2712 = vpack.c.bf16 %v2708, %v2708
    %v2713 = vpack.c.bf16 %v2709, %v2709
    %v2714 = vpack.c.bf16 %v2710, %v2710
    %v2715 = vpack.c.bf16 %v2711, %v2711
    %v2716 = vld [vmem:[#allocation7] sm:$0xf]
    %v2717 = vld [vmem:[#allocation7 + $0x4] sm:$0xf]
    %v2718 = vld [vmem:[#allocation7 + $0x8] sm:$0xf]
    %v2719 = vld [vmem:[#allocation7 + $0xc] sm:$0xf]
    %v2720 = vld [vmem:[#allocation7 + $0x10] sm:$0xf]
    %v2721 = vld [vmem:[#allocation7 + $0x14] sm:$0xf]
    %v2722 = vld [vmem:[#allocation7 + $0x18] sm:$0xf]
    %v2723 = vld [vmem:[#allocation7 + $0x1c] sm:$0xf]
    %v2724 = vld [vmem:[#allocation7 + $0x20] sm:$0xf]
    %v2725 = vld [vmem:[#allocation7 + $0x24] sm:$0xf]
    %v2726 = vld [vmem:[#allocation7 + $0x28] sm:$0xf]
    %v2727 = vld [vmem:[#allocation7 + $0x2c] sm:$0xf]
    %v2728 = vld [vmem:[#allocation7 + $0x30] sm:$0xf]
    %v2729 = vld [vmem:[#allocation7 + $0x34] sm:$0xf]
    %v2730 = vld [vmem:[#allocation7 + $0x38] sm:$0xf]
    %v2731 = vld [vmem:[#allocation7 + $0x3c] sm:$0xf]
    %v2732 = vld [vmem:[#allocation7 + $0x40] sm:$0xf]
    %v2733 = vld [vmem:[#allocation7 + $0x44] sm:$0xf]
    %v2734 = vld [vmem:[#allocation7 + $0x48] sm:$0xf]
    %v2735 = vld [vmem:[#allocation7 + $0x4c] sm:$0xf]
    %v2736 = vld [vmem:[#allocation7 + $0x50] sm:$0xf]
    %v2737 = vld [vmem:[#allocation7 + $0x54] sm:$0xf]
    %v2738 = vld [vmem:[#allocation7 + $0x58] sm:$0xf]
    %v2739 = vld [vmem:[#allocation7 + $0x5c] sm:$0xf]
    %v2740 = vld [vmem:[#allocation7 + $0x60] sm:$0xf]
    %v2741 = vld [vmem:[#allocation7 + $0x64] sm:$0xf]
    %v2742 = vld [vmem:[#allocation7 + $0x68] sm:$0xf]
    %v2743 = vld [vmem:[#allocation7 + $0x6c] sm:$0xf]
    %v2744 = vld [vmem:[#allocation7 + $0x70] sm:$0xf]
    %v2745 = vld [vmem:[#allocation7 + $0x74] sm:$0xf]
    %v2746 = vld [vmem:[#allocation7 + $0x78] sm:$0xf]
    %v2747 = vld [vmem:[#allocation7 + $0x7c] sm:$0xf]
    %v2748 = vld [vmem:[#allocation7 + $0x80] sm:$0xf]
    %v2749 = vld [vmem:[#allocation7 + $0x84] sm:$0xf]
    %v2750 = vld [vmem:[#allocation7 + $0x88] sm:$0xf]
    %v2751 = vld [vmem:[#allocation7 + $0x8c] sm:$0xf]
    %v2752 = vld [vmem:[#allocation7 + $0x90] sm:$0xf]
    %v2753 = vld [vmem:[#allocation7 + $0x94] sm:$0xf]
    %v2754 = vld [vmem:[#allocation7 + $0x98] sm:$0xf]
    %v2755 = vld [vmem:[#allocation7 + $0x9c] sm:$0xf]
    %v2756 = vld [vmem:[#allocation7 + $0xa0] sm:$0xf]
    %v2757 = vld [vmem:[#allocation7 + $0xa4] sm:$0xf]
    %v2758 = vld [vmem:[#allocation7 + $0xa8] sm:$0xf]
    %v2759 = vld [vmem:[#allocation7 + $0xac] sm:$0xf]
    %v2760 = vld [vmem:[#allocation7 + $0xb0] sm:$0xf]
    %v2761 = vld [vmem:[#allocation7 + $0xb4] sm:$0xf]
    %v2762 = vld [vmem:[#allocation7 + $0xb8] sm:$0xf]
    %v2763 = vld [vmem:[#allocation7 + $0xbc] sm:$0xf]
    %v2764 = vld [vmem:[#allocation7 + $0xc0] sm:$0xf]
    %v2765 = vld [vmem:[#allocation7 + $0xc4] sm:$0xf]
    %v2766 = vld [vmem:[#allocation7 + $0xc8] sm:$0xf]
    %v2767 = vld [vmem:[#allocation7 + $0xcc] sm:$0xf]
    %v2768 = vld [vmem:[#allocation7 + $0xd0] sm:$0xf]
    %v2769 = vld [vmem:[#allocation7 + $0xd4] sm:$0xf]
    %v2770 = vld [vmem:[#allocation7 + $0xd8] sm:$0xf]
    %v2771 = vld [vmem:[#allocation7 + $0xdc] sm:$0xf]
    %v2772 = vld [vmem:[#allocation7 + $0xe0] sm:$0xf]
    %v2773 = vld [vmem:[#allocation7 + $0xe4] sm:$0xf]
    %v2774 = vld [vmem:[#allocation7 + $0xe8] sm:$0xf]
    %v2775 = vld [vmem:[#allocation7 + $0xec] sm:$0xf]
    %v2776 = vld [vmem:[#allocation7 + $0xf0] sm:$0xf]
    %v2777 = vld [vmem:[#allocation7 + $0xf4] sm:$0xf]
    %v2778 = vld [vmem:[#allocation7 + $0xf8] sm:$0xf]
    %v2779 = vld [vmem:[#allocation7 + $0xfc] sm:$0xf]
    %v2781 = vlaneseq
    %v2782 = vshrl.u32 %v2781, 7
    %v2783 = vsub.s32 0, %v2782
    %v2784 = vrot.slane %v80, %v2783
    %2785 = vset.pattern.permute.xlu0 0
    %2786 = vperm.xlu0 %2785, %v2784
    %v2787 = vpop.permute.xlu0 %2786
    %v2853 = vunpack.c.l.b16 %v2716
    %v2854 = vunpack.c.l.b16 %v2717
    %v2855 = vunpack.c.l.b16 %v2718
    %v2856 = vunpack.c.l.b16 %v2719
    %v2857 = vunpack.c.l.b16 %v2720
    %v2858 = vunpack.c.l.b16 %v2721
    %v2859 = vunpack.c.l.b16 %v2722
    %v2860 = vunpack.c.l.b16 %v2723
    %v2861 = vunpack.c.l.b16 %v2724
    %v2862 = vunpack.c.l.b16 %v2725
    %v2863 = vunpack.c.l.b16 %v2726
    %v2864 = vunpack.c.l.b16 %v2727
    %v2865 = vunpack.c.l.b16 %v2728
    %v2866 = vunpack.c.l.b16 %v2729
    %v2867 = vunpack.c.l.b16 %v2730
    %v2868 = vunpack.c.l.b16 %v2731
    %v2869 = vunpack.c.l.b16 %v2732
    %v2870 = vunpack.c.l.b16 %v2733
    %v2871 = vunpack.c.l.b16 %v2734
    %v2872 = vunpack.c.l.b16 %v2735
    %v2873 = vunpack.c.l.b16 %v2736
    %v2874 = vunpack.c.l.b16 %v2737
    %v2875 = vunpack.c.l.b16 %v2738
    %v2876 = vunpack.c.l.b16 %v2739
    %v2877 = vunpack.c.l.b16 %v2740
    %v2878 = vunpack.c.l.b16 %v2741
    %v2879 = vunpack.c.l.b16 %v2742
    %v2880 = vunpack.c.l.b16 %v2743
    %v2881 = vunpack.c.l.b16 %v2744
    %v2882 = vunpack.c.l.b16 %v2745
    %v2883 = vunpack.c.l.b16 %v2746
    %v2884 = vunpack.c.l.b16 %v2747
    %v2885 = vunpack.c.l.b16 %v2748
    %v2886 = vunpack.c.l.b16 %v2749
    %v2887 = vunpack.c.l.b16 %v2750
    %v2888 = vunpack.c.l.b16 %v2751
    %v2889 = vunpack.c.l.b16 %v2752
    %v2890 = vunpack.c.l.b16 %v2753
    %v2891 = vunpack.c.l.b16 %v2754
    %v2892 = vunpack.c.l.b16 %v2755
    %v2893 = vunpack.c.l.b16 %v2756
    %v2894 = vunpack.c.l.b16 %v2757
    %v2895 = vunpack.c.l.b16 %v2758
    %v2896 = vunpack.c.l.b16 %v2759
    %v2897 = vunpack.c.l.b16 %v2760
    %v2898 = vunpack.c.l.b16 %v2761
    %v2899 = vunpack.c.l.b16 %v2762
    %v2900 = vunpack.c.l.b16 %v2763
    %v2901 = vunpack.c.l.b16 %v2764
    %v2902 = vunpack.c.l.b16 %v2765
    %v2903 = vunpack.c.l.b16 %v2766
    %v2904 = vunpack.c.l.b16 %v2767
    %v2905 = vunpack.c.l.b16 %v2768
    %v2906 = vunpack.c.l.b16 %v2769
    %v2907 = vunpack.c.l.b16 %v2770
    %v2908 = vunpack.c.l.b16 %v2771
    %v2909 = vunpack.c.l.b16 %v2772
    %v2910 = vunpack.c.l.b16 %v2773
    %v2911 = vunpack.c.l.b16 %v2774
    %v2912 = vunpack.c.l.b16 %v2775
    %v2913 = vunpack.c.l.b16 %v2776
    %v2914 = vunpack.c.l.b16 %v2777
    %v2915 = vunpack.c.l.b16 %v2778
    %v2916 = vunpack.c.l.b16 %v2779
    %v2917 = vpack.c.b16 %v2854, %v2853
    %v2918 = vpack.c.b16 %v2856, %v2855
    %v2919 = vpack.c.b16 %v2858, %v2857
    %v2920 = vpack.c.b16 %v2860, %v2859
    %v2921 = vpack.c.b16 %v2862, %v2861
    %v2922 = vpack.c.b16 %v2864, %v2863
    %v2923 = vpack.c.b16 %v2866, %v2865
    %v2924 = vpack.c.b16 %v2868, %v2867
    %v2925 = vpack.c.b16 %v2870, %v2869
    %v2926 = vpack.c.b16 %v2872, %v2871
    %v2927 = vpack.c.b16 %v2874, %v2873
    %v2928 = vpack.c.b16 %v2876, %v2875
    %v2929 = vpack.c.b16 %v2878, %v2877
    %v2930 = vpack.c.b16 %v2880, %v2879
    %v2931 = vpack.c.b16 %v2882, %v2881
    %v2932 = vpack.c.b16 %v2884, %v2883
    %v2933 = vpack.c.b16 %v2886, %v2885
    %v2934 = vpack.c.b16 %v2888, %v2887
    %v2935 = vpack.c.b16 %v2890, %v2889
    %v2936 = vpack.c.b16 %v2892, %v2891
    %v2937 = vpack.c.b16 %v2894, %v2893
    %v2938 = vpack.c.b16 %v2896, %v2895
    %v2939 = vpack.c.b16 %v2898, %v2897
    %v2940 = vpack.c.b16 %v2900, %v2899
    %v2941 = vpack.c.b16 %v2902, %v2901
    %v2942 = vpack.c.b16 %v2904, %v2903
    %v2943 = vpack.c.b16 %v2906, %v2905
    %v2944 = vpack.c.b16 %v2908, %v2907
    %v2945 = vpack.c.b16 %v2910, %v2909
    %v2946 = vpack.c.b16 %v2912, %v2911
    %v2947 = vpack.c.b16 %v2914, %v2913
    %v2948 = vpack.c.b16 %v2916, %v2915
    %2981 = vmatprep.subr.bf16.mxu0 0
    %2982 = vmatpush1.bf16.msra.mxu0 %v2924
    %2983 = vmatprep.subr.bf16.mxu0 0
    %2984 = vmatpush1.bf16.msra.mxu0 %v2923
    %2985 = vmatprep.subr.bf16.mxu0 0
    %2986 = vmatpush1.bf16.msra.mxu0 %v2922
    %2987 = vmatprep.subr.bf16.mxu0 0
    %2988 = vmatpush1.bf16.msra.mxu0 %v2921
    %2989 = vmatprep.subr.bf16.mxu0 0
    %2990 = vmatpush1.bf16.msra.mxu0 %v2920
    %2991 = vmatprep.subr.bf16.mxu0 0
    %2992 = vmatpush1.bf16.msra.mxu0 %v2919
    %2993 = vmatprep.subr.bf16.mxu0 0
    %2994 = vmatpush1.bf16.msra.mxu0 %v2918
    %2995 = vmatprep.subr.bf16.mxu0 0
    %2996 = vmatpush1.bf16.msra.mxu0 %v2917
    %2997 = vmatprep.subr.bf16.mxu0 0
    %2998 = vmatpush2.bf16.msra.mxu0 %v2932
    %2999 = vmatprep.subr.bf16.mxu0 0
    %3000 = vmatpush2.bf16.msra.mxu0 %v2931
    %3001 = vmatprep.subr.bf16.mxu0 0
    %3002 = vmatpush2.bf16.msra.mxu0 %v2930
    %3003 = vmatprep.subr.bf16.mxu0 0
    %3004 = vmatpush2.bf16.msra.mxu0 %v2929
    %3005 = vmatprep.subr.bf16.mxu0 0
    %3006 = vmatpush2.bf16.msra.mxu0 %v2928
    %3007 = vmatprep.subr.bf16.mxu0 0
    %3008 = vmatpush2.bf16.msra.mxu0 %v2927
    %3009 = vmatprep.subr.bf16.mxu0 0
    %3010 = vmatpush2.bf16.msra.mxu0 %v2926
    %3011 = vmatprep.subr.bf16.mxu0 0
    %3012 = vmatpush2.bf16.msra.mxu0 %v2925
    %3013 = vmatprep.mubr.bf16.mxu0 %v2713
    %3014 = vmatmul.mubr.bf16.gmra.mxu0 %v2712
    %v3015 = vpop.f32.mrf.mxu0
    %v3016 = vadd.f32 %v2787, %v3015
    %v3017 = vpop.f32.mrf.mxu0
    %v3018 = vpop.f32.mrf.mxu0
    %v3019 = vpop.f32.mrf.mxu0
    %3020 = vdwg.mxu0
    %3021 = vmatprep.subr.bf16.mxu0 0
    %3022 = vmatpush1.bf16.msra.mxu0 %v2940
    %3023 = vmatprep.subr.bf16.mxu0 0
    %3024 = vmatpush1.bf16.msra.mxu0 %v2939
    %3025 = vmatprep.subr.bf16.mxu0 0
    %3026 = vmatpush1.bf16.msra.mxu0 %v2938
    %3027 = vmatprep.subr.bf16.mxu0 0
    %3028 = vmatpush1.bf16.msra.mxu0 %v2937
    %3029 = vmatprep.subr.bf16.mxu0 0
    %3030 = vmatpush1.bf16.msra.mxu0 %v2936
    %3031 = vmatprep.subr.bf16.mxu0 0
    %3032 = vmatpush1.bf16.msra.mxu0 %v2935
    %3033 = vmatprep.subr.bf16.mxu0 0
    %3034 = vmatpush1.bf16.msra.mxu0 %v2934
    %3035 = vmatprep.subr.bf16.mxu0 0
    %3036 = vmatpush1.bf16.msra.mxu0 %v2933
    %3037 = vmatprep.subr.bf16.mxu0 0
    %3038 = vmatpush2.bf16.msra.mxu0 %v2948
    %3039 = vmatprep.subr.bf16.mxu0 0
    %3040 = vmatpush2.bf16.msra.mxu0 %v2947
    %3041 = vmatprep.subr.bf16.mxu0 0
    %3042 = vmatpush2.bf16.msra.mxu0 %v2946
    %3043 = vmatprep.subr.bf16.mxu0 0
    %3044 = vmatpush2.bf16.msra.mxu0 %v2945
    %3045 = vmatprep.subr.bf16.mxu0 0
    %3046 = vmatpush2.bf16.msra.mxu0 %v2944
    %3047 = vmatprep.subr.bf16.mxu0 0
    %3048 = vmatpush2.bf16.msra.mxu0 %v2943
    %3049 = vmatprep.subr.bf16.mxu0 0
    %3050 = vmatpush2.bf16.msra.mxu0 %v2942
    %3051 = vmatprep.subr.bf16.mxu0 0
    %3052 = vmatpush2.bf16.msra.mxu0 %v2941
    %3053 = vmatprep.mubr.bf16.mxu0 %v2715
    %3054 = vmatmul.mubr.bf16.gmra.mxu0 %v2714
    %v3055 = vpop.f32.mrf.mxu0
    %v3056 = vadd.f32 %v3016, %v3055
    %v3057 = vpop.f32.mrf.mxu0
    %v3058 = vpop.f32.mrf.mxu0
    %v3059 = vpop.f32.mrf.mxu0
    %3060 = vdwg.mxu0
    %3061 = vst [vmem:[%s6] sm:$0xff] %v3056
    // Predicated region
    $region42: #{actor_forward.1} parent=1 // pred_check
      _
    $region43: #{actor_forward.1} parent=1 // pred_check_branch
      %3063 = sbr.rel (0) target = $region45
    $region44: #{actor_forward.1} parent=1 // pred_region
      _
    $region45: #{actor_forward.1} parent=1 // pred_fallthru
      _
    // Predicated region
    $region46: #{actor_forward.1} parent=1 // pred_check
      _
    $region47: #{actor_forward.1} parent=1 // pred_check_branch
      %3065 = sbr.rel (0) target = $region49
    $region48: #{actor_forward.1} parent=1 // pred_region
      _
    $region49: #{actor_forward.1} parent=1 // pred_fallthru
      _
    %3066 = vsyncpa [#allocation3], 1
    %3067 = vsyncpa [#allocation5], 1
    %3068 = vsyncpa [#allocation8], 1

</llo_original>
